<compile_context>
chip_gen: v6e
topology: v6e:2x2x1
jax: 0.10.0
libtpu: 0.0.40
codegen_flags: <defaults>
</compile_context>

<pallas_src>
import jax
import jax.numpy as jnp
from jax.experimental import pallas as pl
from jax.experimental.pallas import tpu as pltpu

SEQ_LEN = 62
INPUT_SIZE = 5
INPUT_PAD = 8          # pad K: 5 -> 8 (sublane-clean)
HIDDEN = 16
FC1_OUT = 512
NUM_CLASSES = 3
CLS_PAD = 128          # lane-dense classifier output
BN_EPS = 1e-5


def _sigmoid(v):
    return 1.0 / (1.0 + jnp.exp(-v))


def _gru_classifier_kernel(x_ref, wi_ref, bi_ref, wh_ref, bh_ref,
                           w1_ref, b1_ref, w2_ref, b2_ref,
                           cls_ref, feat_ref, acc_ref):
    # Hoist the tiny GRU weights out of the time loop (a few vregs each).
    wi_r, wi_z, wi_n = wi_ref[0], wi_ref[1], wi_ref[2]     # (8, 16) each
    wh_r, wh_z, wh_n = wh_ref[0], wh_ref[1], wh_ref[2]     # (16, 16)
    bi_r, bi_z, bi_n = bi_ref[0], bi_ref[1], bi_ref[2]     # (1, 16)
    bh_r, bh_z, bh_n = bh_ref[0], bh_ref[1], bh_ref[2]     # (1, 16)

    acc_ref[...] = jnp.zeros_like(acc_ref)                  # fc1 accumulator (TB, 512)

    tb = x_ref.shape[1]

    def step(t, h):
        x_t = x_ref[t]                                      # (TB, 8)
        # PyTorch GRU gate math (gate order r, z, n; b_hn stays inside r*(...)).
        r = _sigmoid(jnp.dot(x_t, wi_r, preferred_element_type=jnp.float32) + bi_r
                     + jnp.dot(h, wh_r, preferred_element_type=jnp.float32) + bh_r)
        z = _sigmoid(jnp.dot(x_t, wi_z, preferred_element_type=jnp.float32) + bi_z
                     + jnp.dot(h, wh_z, preferred_element_type=jnp.float32) + bh_z)
        n = jnp.tanh(jnp.dot(x_t, wi_n, preferred_element_type=jnp.float32) + bi_n
                     + r * (jnp.dot(h, wh_n, preferred_element_type=jnp.float32) + bh_n))
        h_new = (1.0 - z) * n + z * h                       # (TB, 16)

        # features output (time-major block; wrapper transposes/reshapes).
        feat_ref[t] = h_new

        # Fused fc1 (with BN folded in): acc += h_t @ W1_folded[t]   (16 -> 512)
        acc_ref[...] += jnp.dot(h_new, w1_ref[t],
                                preferred_element_type=jnp.float32)
        return h_new

    h0 = jnp.zeros((tb, HIDDEN), jnp.float32)               # PyTorch h0=None -> zeros
    jax.lax.fori_loop(0, SEQ_LEN, step, h0)

    # fc1 bias (BN folded) + ReLU, then fc3 into a lane-dense 128-wide tile.
    h1 = jnp.maximum(acc_ref[...] + b1_ref[...], 0.0)       # (TB, 512)
    cls_ref[...] = jnp.dot(h1, w2_ref[...],
                           preferred_element_type=jnp.float32) + b2_ref[...]


def _round_up(n, m):
    return ((n + m - 1) // m) * m


def init_params(key):
    """Raw PyTorch-shaped parameters (GRU + fc1 + BN + fc3), PyTorch default init."""
    ks = jax.random.split(key, 12)
    bg = 1.0 / jnp.sqrt(HIDDEN)
    w_ih = jax.random.uniform(ks[0], (3 * HIDDEN, INPUT_SIZE), jnp.float32, -bg, bg)
    w_hh = jax.random.uniform(ks[1], (3 * HIDDEN, HIDDEN), jnp.float32, -bg, bg)
    b_ih = jax.random.uniform(ks[2], (3 * HIDDEN,), jnp.float32, -bg, bg)
    b_hh = jax.random.uniform(ks[3], (3 * HIDDEN,), jnp.float32, -bg, bg)

    feat_dim = SEQ_LEN * HIDDEN                    # 992
    b1 = 1.0 / jnp.sqrt(feat_dim)
    fc1_w = jax.random.uniform(ks[4], (FC1_OUT, feat_dim), jnp.float32, -b1, b1)
    fc1_b = jax.random.uniform(ks[5], (FC1_OUT,), jnp.float32, -b1, b1)

    b2 = 1.0 / jnp.sqrt(FC1_OUT)
    fc2_w = jax.random.uniform(ks[6], (NUM_CLASSES, FC1_OUT), jnp.float32, -b2, b2)
    fc2_b = jax.random.uniform(ks[7], (NUM_CLASSES,), jnp.float32, -b2, b2)

    # Non-trivial BN running stats so the folding path is actually exercised.
    gamma = 1.0 + 0.1 * jax.random.normal(ks[8], (FC1_OUT,), jnp.float32)
    beta = 0.1 * jax.random.normal(ks[9], (FC1_OUT,), jnp.float32)
    running_mean = 0.1 * jax.random.normal(ks[10], (FC1_OUT,), jnp.float32)
    running_var = 1.0 + 0.1 * jax.random.uniform(ks[11], (FC1_OUT,), jnp.float32)
    return (w_ih, b_ih, w_hh, b_hh, fc1_w, fc1_b,
            gamma, beta, running_mean, running_var, fc2_w, fc2_b)


def prepare_params(raw):
    """One-time preprocessing into kernel-friendly layouts (transpose, pad, fold BN)."""
    (w_ih, b_ih, w_hh, b_hh, fc1_w, fc1_b,
     gamma, beta, mean, var, fc2_w, fc2_b) = raw

    # GRU weights stacked per gate: (3, K, 16), K padded 5 -> 8 for the input side.
    wi = jnp.transpose(w_ih.reshape(3, HIDDEN, INPUT_SIZE), (0, 2, 1))   # (3, 5, 16)
    wi = jnp.zeros((3, INPUT_PAD, HIDDEN), jnp.float32).at[:, :INPUT_SIZE, :].set(wi)
    wh = jnp.transpose(w_hh.reshape(3, HIDDEN, HIDDEN), (0, 2, 1))       # (3, 16, 16)
    bi = b_ih.reshape(3, 1, HIDDEN)
    bh = b_hh.reshape(3, 1, HIDDEN)

    # Fold eval-mode BatchNorm into fc1: y = (x@W1^T + b1 - mean)*s + beta, s = g*rsqrt(var+eps)
    s = gamma * jax.lax.rsqrt(var + BN_EPS)                              # (512,)
    w1f = (fc1_w.T * s[None, :]).reshape(SEQ_LEN, HIDDEN, FC1_OUT)       # (62, 16, 512)
    b1f = ((fc1_b - mean) * s + beta).reshape(1, FC1_OUT)                # (1, 512)

    # fc3 padded to 128 output lanes (lane-dense store; slice [:, :3] outside).
    w2p = jnp.zeros((FC1_OUT, CLS_PAD), jnp.float32).at[:, :NUM_CLASSES].set(fc2_w.T)
    b2p = jnp.zeros((1, CLS_PAD), jnp.float32).at[0, :NUM_CLASSES].set(fc2_b)
    return (wi, bi, wh, bh, w1f, b1f, w2p, b2p)


def rnn_forward(x, kparams, *, tb=64):
    """x: (B, 62, 5) f32. Returns (classifier (B, 3), features (B, 992))."""
    B, S, F = x.shape
    assert S == SEQ_LEN and F == INPUT_SIZE
    wi, bi, wh, bh, w1f, b1f, w2p, b2p = kparams

    TB = min(tb, _round_up(B, 8))
    B_pad = _round_up(B, TB)

    # Pad batch + input-feature dims, go time-major so the kernel indexes x_ref[t].
    x_p = jnp.zeros((B_pad, SEQ_LEN, INPUT_PAD), jnp.float32)
    x_p = x_p.at[:B, :, :INPUT_SIZE].set(x)
    x_t = jnp.transpose(x_p, (1, 0, 2))                                  # (62, B_pad, 8)

    grid = (B_pad // TB,)
    cls_pad, feat_t = pl.pallas_call(
        _gru_classifier_kernel,
        out_shape=(
            jax.ShapeDtypeStruct((B_pad, CLS_PAD), jnp.float32),
            jax.ShapeDtypeStruct((SEQ_LEN, B_pad, HIDDEN), jnp.float32),
        ),
        grid_spec=pltpu.PrefetchScalarGridSpec(
            num_scalar_prefetch=0,
            grid=grid,
            in_specs=[
                pl.BlockSpec((SEQ_LEN, TB, INPUT_PAD), lambda i: (0, i, 0)),  # x
                pl.BlockSpec((3, INPUT_PAD, HIDDEN), lambda i: (0, 0, 0)),    # wi
                pl.BlockSpec((3, 1, HIDDEN), lambda i: (0, 0, 0)),            # bi
                pl.BlockSpec((3, HIDDEN, HIDDEN), lambda i: (0, 0, 0)),       # wh
                pl.BlockSpec((3, 1, HIDDEN), lambda i: (0, 0, 0)),            # bh
                pl.BlockSpec((SEQ_LEN, HIDDEN, FC1_OUT), lambda i: (0, 0, 0)),# w1 folded
                pl.BlockSpec((1, FC1_OUT), lambda i: (0, 0)),                 # b1 folded
                pl.BlockSpec((FC1_OUT, CLS_PAD), lambda i: (0, 0)),           # w2 padded
                pl.BlockSpec((1, CLS_PAD), lambda i: (0, 0)),                 # b2 padded
            ],
            out_specs=[
                pl.BlockSpec((TB, CLS_PAD), lambda i: (i, 0)),                # cls
                pl.BlockSpec((SEQ_LEN, TB, HIDDEN), lambda i: (0, i, 0)),     # feat
            ],
            scratch_shapes=[pltpu.VMEM((TB, FC1_OUT), jnp.float32)],          # fc1 acc
        ),
        compiler_params=pltpu.CompilerParams(
            dimension_semantics=("parallel",)),
    )(x_t, wi, bi, wh, bh, w1f, b1f, w2p, b2p)

    cls = cls_pad[:B, :NUM_CLASSES]
    feat = jnp.transpose(feat_t, (1, 0, 2))[:B].reshape(B, SEQ_LEN * HIDDEN)
    return cls, feat


def reference_forward(x, raw):
    """Pure-JAX reference (unfolded BN, plain GRU scan) for correctness checking."""
    (w_ih, b_ih, w_hh, b_hh, fc1_w, fc1_b,
     gamma, beta, mean, var, fc2_w, fc2_b) = raw
    B = x.shape[0]

    def step(h, x_t):
        gi = x_t @ w_ih.T + b_ih
        gh = h @ w_hh.T + b_hh
        r = _sigmoid(gi[:, :HIDDEN] + gh[:, :HIDDEN])
        z = _sigmoid(gi[:, HIDDEN:2 * HIDDEN] + gh[:, HIDDEN:2 * HIDDEN])
        n = jnp.tanh(gi[:, 2 * HIDDEN:] + r * gh[:, 2 * HIDDEN:])
        h_new = (1.0 - z) * n + z * h
        return h_new, h_new

    h0 = jnp.zeros((B, HIDDEN), jnp.float32)
    _, hs = jax.lax.scan(step, h0, jnp.transpose(x, (1, 0, 2)))          # (62, B, 16)
    feat = jnp.transpose(hs, (1, 0, 2)).reshape(B, SEQ_LEN * HIDDEN)     # (B, 992)

    h1 = feat @ fc1_w.T + fc1_b
    h1 = (h1 - mean) * jax.lax.rsqrt(var + BN_EPS) * gamma + beta
    h1 = jnp.maximum(h1, 0.0)
    cls = h1 @ fc2_w.T + fc2_b
    return cls, feat


if __name__ == "__main__":
    key = jax.random.PRNGKey(0)
    k_param, k_x = jax.random.split(key)
    raw_params = init_params(k_param)
    kparams = prepare_params(raw_params)

    B = 8  # small batch; seq=62 and input=5 are fixed by the architecture
    x = jax.random.normal(k_x, (B, SEQ_LEN, INPUT_SIZE), jnp.float32)

    cls, feat = jax.jit(rnn_forward)(x, kparams)
    jax.block_until_ready((cls, feat))

    cls_exp, feat_exp = reference_forward(x, raw_params)
    assert cls.shape == (B, NUM_CLASSES) and feat.shape == (B, SEQ_LEN * HIDDEN)
    assert jnp.allclose(feat, feat_exp, atol=1e-4, rtol=1e-4), \
        float(jnp.max(jnp.abs(feat - feat_exp)))
    assert jnp.allclose(cls, cls_exp, atol=1e-4, rtol=1e-4), \
        float(jnp.max(jnp.abs(cls - cls_exp)))

    print("KERNEL_OK")
</pallas_src>

<mosaic_0001>
module attributes {stable_mosaic.version = 11 : i64} {
  func.func @_gru_classifier_kernel(%arg0: i32, %arg1: memref<62x8x8xf32, #tpu.memory_space<vmem>>, %arg2: memref<3x8x16xf32, #tpu.memory_space<vmem>>, %arg3: memref<3x1x16xf32, #tpu.memory_space<vmem>>, %arg4: memref<3x16x16xf32, #tpu.memory_space<vmem>>, %arg5: memref<3x1x16xf32, #tpu.memory_space<vmem>>, %arg6: memref<62x16x512xf32, #tpu.memory_space<vmem>>, %arg7: memref<1x512xf32, #tpu.memory_space<vmem>>, %arg8: memref<512x128xf32, #tpu.memory_space<vmem>>, %arg9: memref<1x128xf32, #tpu.memory_space<vmem>>, %arg10: memref<8x128xf32, #tpu.memory_space<vmem>>, %arg11: memref<62x8x16xf32, #tpu.memory_space<vmem>>, %arg12: memref<8x512xf32, #tpu.memory_space<vmem>>) attributes {dimension_semantics = [#tpu.dimension_semantics<parallel>], iteration_bounds = array<i64: 1>, scalar_prefetch = 0 : i64, scratch_operands = 1 : i64, tpu.core_type = #tpu.core_type<tc>, window_params = [{transform_indices = @transform_0, window_bounds = array<i64: 62, 8, 8>}, {pipeline_mode = #tpu.pipeline_mode<synchronous>, transform_indices = @transform_1, window_bounds = array<i64: 3, 8, 16>}, {pipeline_mode = #tpu.pipeline_mode<synchronous>, transform_indices = @transform_2, window_bounds = array<i64: 3, 1, 16>}, {pipeline_mode = #tpu.pipeline_mode<synchronous>, transform_indices = @transform_3, window_bounds = array<i64: 3, 16, 16>}, {pipeline_mode = #tpu.pipeline_mode<synchronous>, transform_indices = @transform_4, window_bounds = array<i64: 3, 1, 16>}, {pipeline_mode = #tpu.pipeline_mode<synchronous>, transform_indices = @transform_5, window_bounds = array<i64: 62, 16, 512>}, {pipeline_mode = #tpu.pipeline_mode<synchronous>, transform_indices = @transform_6, window_bounds = array<i64: 1, 512>}, {pipeline_mode = #tpu.pipeline_mode<synchronous>, transform_indices = @transform_7, window_bounds = array<i64: 512, 128>}, {pipeline_mode = #tpu.pipeline_mode<synchronous>, transform_indices = @transform_8, window_bounds = array<i64: 1, 128>}, {transform_indices = @transform_9, window_bounds = array<i64: 8, 128>}, {transform_indices = @transform_10, window_bounds = array<i64: 62, 8, 16>}]} {
    %c0 = arith.constant 0 : index
    %c0_0 = arith.constant 0 : index
    %c0_1 = arith.constant 0 : index
    %0 = vector.load %arg2[%c0, %c0_0, %c0_1] : memref<3x8x16xf32, #tpu.memory_space<vmem>>, vector<1x8x16xf32>
    %1 = vector.shape_cast %0 : vector<1x8x16xf32> to vector<8x16xf32>
    %c1 = arith.constant 1 : index
    %c0_2 = arith.constant 0 : index
    %c0_3 = arith.constant 0 : index
    %2 = vector.load %arg2[%c1, %c0_2, %c0_3] : memref<3x8x16xf32, #tpu.memory_space<vmem>>, vector<1x8x16xf32>
    %3 = vector.shape_cast %2 : vector<1x8x16xf32> to vector<8x16xf32>
    %c2 = arith.constant 2 : index
    %c0_4 = arith.constant 0 : index
    %c0_5 = arith.constant 0 : index
    %4 = vector.load %arg2[%c2, %c0_4, %c0_5] : memref<3x8x16xf32, #tpu.memory_space<vmem>>, vector<1x8x16xf32>
    %5 = vector.shape_cast %4 : vector<1x8x16xf32> to vector<8x16xf32>
    %c0_6 = arith.constant 0 : index
    %c0_7 = arith.constant 0 : index
    %c0_8 = arith.constant 0 : index
    %6 = vector.load %arg4[%c0_6, %c0_7, %c0_8] : memref<3x16x16xf32, #tpu.memory_space<vmem>>, vector<1x16x16xf32>
    %7 = vector.shape_cast %6 : vector<1x16x16xf32> to vector<16x16xf32>
    %c1_9 = arith.constant 1 : index
    %c0_10 = arith.constant 0 : index
    %c0_11 = arith.constant 0 : index
    %8 = vector.load %arg4[%c1_9, %c0_10, %c0_11] : memref<3x16x16xf32, #tpu.memory_space<vmem>>, vector<1x16x16xf32>
    %9 = vector.shape_cast %8 : vector<1x16x16xf32> to vector<16x16xf32>
    %c2_12 = arith.constant 2 : index
    %c0_13 = arith.constant 0 : index
    %c0_14 = arith.constant 0 : index
    %10 = vector.load %arg4[%c2_12, %c0_13, %c0_14] : memref<3x16x16xf32, #tpu.memory_space<vmem>>, vector<1x16x16xf32>
    %11 = vector.shape_cast %10 : vector<1x16x16xf32> to vector<16x16xf32>
    %c0_15 = arith.constant 0 : index
    %c0_16 = arith.constant 0 : index
    %c0_17 = arith.constant 0 : index
    %12 = vector.load %arg3[%c0_15, %c0_16, %c0_17] : memref<3x1x16xf32, #tpu.memory_space<vmem>>, vector<1x1x16xf32>
    %13 = vector.shape_cast %12 : vector<1x1x16xf32> to vector<1x16xf32>
    %c1_18 = arith.constant 1 : index
    %c0_19 = arith.constant 0 : index
    %c0_20 = arith.constant 0 : index
    %14 = vector.load %arg3[%c1_18, %c0_19, %c0_20] : memref<3x1x16xf32, #tpu.memory_space<vmem>>, vector<1x1x16xf32>
    %15 = vector.shape_cast %14 : vector<1x1x16xf32> to vector<1x16xf32>
    %c2_21 = arith.constant 2 : index
    %c0_22 = arith.constant 0 : index
    %c0_23 = arith.constant 0 : index
    %16 = vector.load %arg3[%c2_21, %c0_22, %c0_23] : memref<3x1x16xf32, #tpu.memory_space<vmem>>, vector<1x1x16xf32>
    %17 = vector.shape_cast %16 : vector<1x1x16xf32> to vector<1x16xf32>
    %c0_24 = arith.constant 0 : index
    %c0_25 = arith.constant 0 : index
    %c0_26 = arith.constant 0 : index
    %18 = vector.load %arg5[%c0_24, %c0_25, %c0_26] : memref<3x1x16xf32, #tpu.memory_space<vmem>>, vector<1x1x16xf32>
    %19 = vector.shape_cast %18 : vector<1x1x16xf32> to vector<1x16xf32>
    %c1_27 = arith.constant 1 : index
    %c0_28 = arith.constant 0 : index
    %c0_29 = arith.constant 0 : index
    %20 = vector.load %arg5[%c1_27, %c0_28, %c0_29] : memref<3x1x16xf32, #tpu.memory_space<vmem>>, vector<1x1x16xf32>
    %21 = vector.shape_cast %20 : vector<1x1x16xf32> to vector<1x16xf32>
    %c2_30 = arith.constant 2 : index
    %c0_31 = arith.constant 0 : index
    %c0_32 = arith.constant 0 : index
    %22 = vector.load %arg5[%c2_30, %c0_31, %c0_32] : memref<3x1x16xf32, #tpu.memory_space<vmem>>, vector<1x1x16xf32>
    %23 = vector.shape_cast %22 : vector<1x1x16xf32> to vector<1x16xf32>
    %cst = arith.constant 0.000000e+00 : f32
    %24 = vector.broadcast %cst : f32 to vector<8x512xf32>
    %c0_33 = arith.constant 0 : index
    %c0_34 = arith.constant 0 : index
    %25 = vector.load %arg12[%c0_33, %c0_34] : memref<8x512xf32, #tpu.memory_space<vmem>>, vector<8x512xf32>
    tpu.vector_store %arg12[%c0_33, %c0_34], %24 {strides = array<i32>} : memref<8x512xf32, #tpu.memory_space<vmem>>, vector<8x512xf32>,
    %cst_35 = arith.constant 0.000000e+00 : f32
    %26 = vector.broadcast %cst_35 : f32 to vector<8x16xf32>
    %c0_i32 = arith.constant 0 : i32
    %c62_i32 = arith.constant 62 : i32
    %27 = arith.addi %c0_i32, %c62_i32 : i32
    %c1_i32 = arith.constant 1 : i32
    %28 = scf.for %arg13 = %c0_i32 to %27 step %c1_i32 iter_args(%arg14 = %26) -> (vector<8x16xf32>)  : i32 {
      %41 = arith.index_cast %arg13 : i32 to index
      %c0_49 = arith.constant 0 : index
      %c0_50 = arith.constant 0 : index
      %42 = vector.load %arg1[%41, %c0_49, %c0_50] : memref<62x8x8xf32, #tpu.memory_space<vmem>>, vector<1x8x8xf32>
      %43 = vector.shape_cast %42 : vector<1x8x8xf32> to vector<8x8xf32>
      %cst_51 = arith.constant dense<0.000000e+00> : vector<8x16xf32>
      %44 = tpu.matmul %43, %1, %cst_51 {dimension_numbers = #tpu.dot_dimension_numbers<[1], [0], [0], [1], [0, 0, 1, 1], [], []>} : vector<8x8xf32>, vector<8x16xf32>, vector<8x16xf32> -> vector<8x16xf32>
      %45 = vector.broadcast %13 : vector<1x16xf32> to vector<8x16xf32>
      %46 = arith.addf %44, %45 : vector<8x16xf32>
      %cst_52 = arith.constant dense<0.000000e+00> : vector<8x16xf32>
      %47 = tpu.matmul %arg14, %7, %cst_52 {dimension_numbers = #tpu.dot_dimension_numbers<[1], [0], [0], [1], [0, 0, 1, 1], [], []>} : vector<8x16xf32>, vector<16x16xf32>, vector<8x16xf32> -> vector<8x16xf32>
      %48 = arith.addf %46, %47 : vector<8x16xf32>
      %49 = vector.broadcast %19 : vector<1x16xf32> to vector<8x16xf32>
      %50 = arith.addf %48, %49 : vector<8x16xf32>
      %cst_53 = arith.constant 0.000000e+00 : f32
      %51 = vector.broadcast %cst_53 : f32 to vector<8x16xf32>
      %52 = arith.subf %51, %50 : vector<8x16xf32>
      %53 = math.exp %52 : vector<8x16xf32>
      %cst_54 = arith.constant 1.000000e+00 : f32
      %54 = vector.broadcast %cst_54 : f32 to vector<8x16xf32>
      %55 = arith.addf %54, %53 : vector<8x16xf32>
      %cst_55 = arith.constant 1.000000e+00 : f32
      %56 = vector.broadcast %cst_55 : f32 to vector<8x16xf32>
      %57 = arith.divf %56, %55 : vector<8x16xf32>
      %cst_56 = arith.constant dense<0.000000e+00> : vector<8x16xf32>
      %58 = tpu.matmul %43, %3, %cst_56 {dimension_numbers = #tpu.dot_dimension_numbers<[1], [0], [0], [1], [0, 0, 1, 1], [], []>} : vector<8x8xf32>, vector<8x16xf32>, vector<8x16xf32> -> vector<8x16xf32>
      %59 = vector.broadcast %15 : vector<1x16xf32> to vector<8x16xf32>
      %60 = arith.addf %58, %59 : vector<8x16xf32>
      %cst_57 = arith.constant dense<0.000000e+00> : vector<8x16xf32>
      %61 = tpu.matmul %arg14, %9, %cst_57 {dimension_numbers = #tpu.dot_dimension_numbers<[1], [0], [0], [1], [0, 0, 1, 1], [], []>} : vector<8x16xf32>, vector<16x16xf32>, vector<8x16xf32> -> vector<8x16xf32>
      %62 = arith.addf %60, %61 : vector<8x16xf32>
      %63 = vector.broadcast %21 : vector<1x16xf32> to vector<8x16xf32>
      %64 = arith.addf %62, %63 : vector<8x16xf32>
      %cst_58 = arith.constant 0.000000e+00 : f32
      %65 = vector.broadcast %cst_58 : f32 to vector<8x16xf32>
      %66 = arith.subf %65, %64 : vector<8x16xf32>
      %67 = math.exp %66 : vector<8x16xf32>
      %cst_59 = arith.constant 1.000000e+00 : f32
      %68 = vector.broadcast %cst_59 : f32 to vector<8x16xf32>
      %69 = arith.addf %68, %67 : vector<8x16xf32>
      %cst_60 = arith.constant 1.000000e+00 : f32
      %70 = vector.broadcast %cst_60 : f32 to vector<8x16xf32>
      %71 = arith.divf %70, %69 : vector<8x16xf32>
      %cst_61 = arith.constant dense<0.000000e+00> : vector<8x16xf32>
      %72 = tpu.matmul %43, %5, %cst_61 {dimension_numbers = #tpu.dot_dimension_numbers<[1], [0], [0], [1], [0, 0, 1, 1], [], []>} : vector<8x8xf32>, vector<8x16xf32>, vector<8x16xf32> -> vector<8x16xf32>
      %73 = vector.broadcast %17 : vector<1x16xf32> to vector<8x16xf32>
      %74 = arith.addf %72, %73 : vector<8x16xf32>
      %cst_62 = arith.constant dense<0.000000e+00> : vector<8x16xf32>
      %75 = tpu.matmul %arg14, %11, %cst_62 {dimension_numbers = #tpu.dot_dimension_numbers<[1], [0], [0], [1], [0, 0, 1, 1], [], []>} : vector<8x16xf32>, vector<16x16xf32>, vector<8x16xf32> -> vector<8x16xf32>
      %76 = vector.broadcast %23 : vector<1x16xf32> to vector<8x16xf32>
      %77 = arith.addf %75, %76 : vector<8x16xf32>
      %78 = arith.mulf %57, %77 : vector<8x16xf32>
      %79 = arith.addf %74, %78 : vector<8x16xf32>
      %80 = math.tanh %79 : vector<8x16xf32>
      %cst_63 = arith.constant 1.000000e+00 : f32
      %81 = vector.broadcast %cst_63 : f32 to vector<8x16xf32>
      %82 = arith.subf %81, %71 : vector<8x16xf32>
      %83 = arith.mulf %82, %80 : vector<8x16xf32>
      %84 = arith.mulf %71, %arg14 : vector<8x16xf32>
      %85 = arith.addf %83, %84 : vector<8x16xf32>
      %86 = arith.index_cast %arg13 : i32 to index
      %c0_64 = arith.constant 0 : index
      %c0_65 = arith.constant 0 : index
      %87 = vector.load %arg11[%86, %c0_64, %c0_65] : memref<62x8x16xf32, #tpu.memory_space<vmem>>, vector<1x8x16xf32>
      %88 = vector.shape_cast %87 : vector<1x8x16xf32> to vector<8x16xf32>
      %89 = vector.shape_cast %85 : vector<8x16xf32> to vector<1x8x16xf32>
      tpu.vector_store %arg11[%86, %c0_64, %c0_65], %89 {strides = array<i32>} : memref<62x8x16xf32, #tpu.memory_space<vmem>>, vector<1x8x16xf32>,
      %c0_66 = arith.constant 0 : index
      %c0_67 = arith.constant 0 : index
      %90 = vector.load %arg12[%c0_66, %c0_67] : memref<8x512xf32, #tpu.memory_space<vmem>>, vector<8x512xf32>
      %91 = arith.index_cast %arg13 : i32 to index
      %c0_68 = arith.constant 0 : index
      %c0_69 = arith.constant 0 : index
      %92 = vector.load %arg6[%91, %c0_68, %c0_69] : memref<62x16x512xf32, #tpu.memory_space<vmem>>, vector<1x16x512xf32>
      %93 = vector.shape_cast %92 : vector<1x16x512xf32> to vector<16x512xf32>
      %cst_70 = arith.constant dense<0.000000e+00> : vector<8x512xf32>
      %94 = tpu.matmul %85, %93, %cst_70 {dimension_numbers = #tpu.dot_dimension_numbers<[1], [0], [0], [1], [0, 0, 1, 1], [], []>} : vector<8x16xf32>, vector<16x512xf32>, vector<8x512xf32> -> vector<8x512xf32>
      %95 = arith.addf %90, %94 : vector<8x512xf32>
      %c0_71 = arith.constant 0 : index
      %c0_72 = arith.constant 0 : index
      %96 = vector.load %arg12[%c0_71, %c0_72] : memref<8x512xf32, #tpu.memory_space<vmem>>, vector<8x512xf32>
      tpu.vector_store %arg12[%c0_71, %c0_72], %95 {strides = array<i32>} : memref<8x512xf32, #tpu.memory_space<vmem>>, vector<8x512xf32>,
      scf.yield %85 : vector<8x16xf32>
    }
    %c62_i32_36 = arith.constant 62 : i32
    %c0_37 = arith.constant 0 : index
    %c0_38 = arith.constant 0 : index
    %29 = vector.load %arg12[%c0_37, %c0_38] : memref<8x512xf32, #tpu.memory_space<vmem>>, vector<8x512xf32>
    %c0_39 = arith.constant 0 : index
    %c0_40 = arith.constant 0 : index
    %30 = vector.load %arg7[%c0_39, %c0_40] : memref<1x512xf32, #tpu.memory_space<vmem>>, vector<1x512xf32>
    %31 = vector.broadcast %30 : vector<1x512xf32> to vector<8x512xf32>
    %32 = arith.addf %29, %31 : vector<8x512xf32>
    %cst_41 = arith.constant 0.000000e+00 : f32
    %33 = vector.broadcast %cst_41 : f32 to vector<8x512xf32>
    %34 = arith.maximumf %32, %33 : vector<8x512xf32>
    %c0_42 = arith.constant 0 : index
    %c0_43 = arith.constant 0 : index
    %35 = vector.load %arg8[%c0_42, %c0_43] : memref<512x128xf32, #tpu.memory_space<vmem>>, vector<512x128xf32>
    %cst_44 = arith.constant dense<0.000000e+00> : vector<8x128xf32>
    %36 = tpu.matmul %34, %35, %cst_44 {dimension_numbers = #tpu.dot_dimension_numbers<[1], [0], [0], [1], [0, 0, 1, 1], [], []>} : vector<8x512xf32>, vector<512x128xf32>, vector<8x128xf32> -> vector<8x128xf32>
    %c0_45 = arith.constant 0 : index
    %c0_46 = arith.constant 0 : index
    %37 = vector.load %arg9[%c0_45, %c0_46] : memref<1x128xf32, #tpu.memory_space<vmem>>, vector<1x128xf32>
    %38 = vector.broadcast %37 : vector<1x128xf32> to vector<8x128xf32>
    %39 = arith.addf %36, %38 : vector<8x128xf32>
    %c0_47 = arith.constant 0 : index
    %c0_48 = arith.constant 0 : index
    %40 = vector.load %arg10[%c0_47, %c0_48] : memref<8x128xf32, #tpu.memory_space<vmem>>, vector<8x128xf32>
    tpu.vector_store %arg10[%c0_47, %c0_48], %39 {strides = array<i32>} : memref<8x128xf32, #tpu.memory_space<vmem>>, vector<8x128xf32>,
    return
  }
  func.func @transform_0(%arg0: i32) -> (i32, i32, i32) {
    %c0_i32 = arith.constant 0 : i32
    %c0_i32_0 = arith.constant 0 : i32
    %c0_i32_1 = arith.constant 0 : i32
    return %c0_i32, %arg0, %c0_i32_0 : i32, i32, i32
  }
  func.func @transform_1(%arg0: i32) -> (i32, i32, i32) {
    %c0_i32 = arith.constant 0 : i32
    %c0_i32_0 = arith.constant 0 : i32
    %c0_i32_1 = arith.constant 0 : i32
    %c0_i32_2 = arith.constant 0 : i32
    return %c0_i32, %c0_i32_0, %c0_i32_1 : i32, i32, i32
  }
  func.func @transform_2(%arg0: i32) -> (i32, i32, i32) {
    %c0_i32 = arith.constant 0 : i32
    %c0_i32_0 = arith.constant 0 : i32
    %c0_i32_1 = arith.constant 0 : i32
    %c0_i32_2 = arith.constant 0 : i32
    return %c0_i32, %c0_i32_0, %c0_i32_1 : i32, i32, i32
  }
  func.func @transform_3(%arg0: i32) -> (i32, i32, i32) {
    %c0_i32 = arith.constant 0 : i32
    %c0_i32_0 = arith.constant 0 : i32
    %c0_i32_1 = arith.constant 0 : i32
    %c0_i32_2 = arith.constant 0 : i32
    return %c0_i32, %c0_i32_0, %c0_i32_1 : i32, i32, i32
  }
  func.func @transform_4(%arg0: i32) -> (i32, i32, i32) {
    %c0_i32 = arith.constant 0 : i32
    %c0_i32_0 = arith.constant 0 : i32
    %c0_i32_1 = arith.constant 0 : i32
    %c0_i32_2 = arith.constant 0 : i32
    return %c0_i32, %c0_i32_0, %c0_i32_1 : i32, i32, i32
  }
  func.func @transform_5(%arg0: i32) -> (i32, i32, i32) {
    %c0_i32 = arith.constant 0 : i32
    %c0_i32_0 = arith.constant 0 : i32
    %c0_i32_1 = arith.constant 0 : i32
    %c0_i32_2 = arith.constant 0 : i32
    return %c0_i32, %c0_i32_0, %c0_i32_1 : i32, i32, i32
  }
  func.func @transform_6(%arg0: i32) -> (i32, i32) {
    %c0_i32 = arith.constant 0 : i32
    %c0_i32_0 = arith.constant 0 : i32
    %c0_i32_1 = arith.constant 0 : i32
    return %c0_i32, %c0_i32_0 : i32, i32
  }
  func.func @transform_7(%arg0: i32) -> (i32, i32) {
    %c0_i32 = arith.constant 0 : i32
    %c0_i32_0 = arith.constant 0 : i32
    %c0_i32_1 = arith.constant 0 : i32
    return %c0_i32, %c0_i32_0 : i32, i32
  }
  func.func @transform_8(%arg0: i32) -> (i32, i32) {
    %c0_i32 = arith.constant 0 : i32
    %c0_i32_0 = arith.constant 0 : i32
    %c0_i32_1 = arith.constant 0 : i32
    return %c0_i32, %c0_i32_0 : i32, i32
  }
  func.func @transform_9(%arg0: i32) -> (i32, i32) {
    %c0_i32 = arith.constant 0 : i32
    %c0_i32_0 = arith.constant 0 : i32
    return %arg0, %c0_i32 : i32, i32
  }
  func.func @transform_10(%arg0: i32) -> (i32, i32, i32) {
    %c0_i32 = arith.constant 0 : i32
    %c0_i32_0 = arith.constant 0 : i32
    %c0_i32_1 = arith.constant 0 : i32
    return %c0_i32, %arg0, %c0_i32_0 : i32, i32, i32
  }
}

</mosaic_0001>

<llo_original>
// kernel: rnn_forward.1
$region0: #{rnn_forward.1}
  #allocation0 [shape = 'u32[]', space=smem, size = 0x4, offset = 0x4, fixed_abs, tag = 'smem constant byte address 0x4 - core index']
  #allocation1 [shape = 'u32[144,128]{1,0:T(1,128)}', space=vmem, size = 0x12000, scoped, tag = 'internal scratch']
  #allocation2 [shape = 'f32[8,512]{1,0:T(8,128)}', space=vmem, size = 0x4000, scoped, tag = 'scratch operand']
  %s0 = inlined_call_operand.vmem [shape: f32[62,8,8], index: 0, kind: input, shape index: {}]
  %s1 = inlined_call_operand.hbm [shape: f32[3,8,16], index: 1, kind: input, shape index: {}]
  %s2 = inlined_call_operand.hbm [shape: f32[3,1,16], index: 2, kind: input, shape index: {}]
  %s3 = inlined_call_operand.hbm [shape: f32[3,16,16], index: 3, kind: input, shape index: {}]
  %s4 = inlined_call_operand.hbm [shape: f32[3,1,16], index: 4, kind: input, shape index: {}]
  %s5 = inlined_call_operand.hbm [shape: f32[62,16,512], index: 5, kind: input, shape index: {}]
  %s6 = inlined_call_operand.hbm [shape: f32[1,512], index: 6, kind: input, shape index: {}]
  %s7 = inlined_call_operand.hbm [shape: f32[512,128], index: 7, kind: input, shape index: {}]
  %s8 = inlined_call_operand.hbm [shape: f32[1,128], index: 8, kind: input, shape index: {}]
  %s9 = inlined_call_operand.vmem [shape: f32[8,128], index: 9, kind: output, shape index: {0}]
  %s10 = inlined_call_operand.vmem [shape: f32[62,8,16], index: 10, kind: output, shape index: {1}]
  %11 = xla_tuple %s9, %s10
  %s12 = sld [smem:[#allocation0]]
  $region93: #{rnn_forward.1} parent=0
    _
  %s14 = ssub.s32 1, %s12
  %s15 = scalar_select 0, %s14, %s12
  $region1: #{rnn_forward.1} parent=0
    #allocation3 [shape = 'u8[12288]{0}', space=vmem, size = 0x3000, scoped, tag = 'input window, operand 1, single buffered']
    #allocation4 [shape = 's32[1]{0}', space=sflag, size = 0x4, scoped, tag = 'scoped memory for rnn_forward.1']
    #allocation5 [shape = 'u8[1536]{0}', space=vmem, size = 0x800, scoped, tag = 'input window, operand 2, single buffered']
    #allocation6 [shape = 's32[1]{0}', space=sflag, size = 0x4, scoped, tag = 'scoped memory for rnn_forward.1']
    #allocation7 [shape = 'u8[24576]{0}', space=vmem, size = 0x6000, scoped, tag = 'input window, operand 3, single buffered']
    #allocation8 [shape = 'u8[1536]{0}', space=vmem, size = 0x800, scoped, tag = 'input window, operand 4, single buffered']
    #allocation9 [shape = 's32[1]{0}', space=sflag, size = 0x4, scoped, tag = 'scoped memory for rnn_forward.1']
    #allocation10 [shape = 'u8[2031616]{0}', space=vmem, size = 0x1f0000, scoped, tag = 'input window, operand 5, single buffered']
    #allocation11 [shape = 'u8[2048]{0}', space=vmem, size = 0x800, scoped, tag = 'input window, operand 6, single buffered']
    #allocation12 [shape = 's32[1]{0}', space=sflag, size = 0x4, scoped, tag = 'scoped memory for rnn_forward.1']
    #allocation13 [shape = 'u8[262144]{0}', space=vmem, size = 0x40000, scoped, tag = 'input window, operand 7, single buffered']
    #allocation14 [shape = 'u8[512]{0}', space=vmem, size = 0x400, scoped, tag = 'input window, operand 8, single buffered']
    #allocation15 [shape = 's32[1]{0}', space=sflag, size = 0x4, scoped, tag = 'scoped memory for rnn_forward.1']
    %16 = vsyncpa [#allocation4], 0
    %17 = vsyncpa [#allocation6], 0
    %18 = vsyncpa [#allocation9], 0
    %19 = vsyncpa [#allocation12], 0
    %20 = vsyncpa [#allocation15], 0
    // Predicated region
    $region2: #{rnn_forward.1} parent=1 // pred_check
      _
    $region3: #{rnn_forward.1} parent=1 // pred_check_branch
      %22 = sbr.rel (0) target = $region5
    $region4: #{rnn_forward.1} parent=1 // pred_region
      _
    $region5: #{rnn_forward.1} parent=1 // pred_fallthru
      _
    // Predicated region
    $region6: #{rnn_forward.1} parent=1 // pred_check
      _
    $region7: #{rnn_forward.1} parent=1 // pred_check_branch
      %24 = sbr.rel (0) target = $region9
    $region8: #{rnn_forward.1} parent=1 // pred_region
      %s26 = ssub.s32 384, 384
      %27 = vsyncadd [#allocation4], %s26
      %s28 = sshll.u32 [#allocation3], 4
      %s29 = int_to_ptr.vmem [resolvable:$true] %s28
      %34 = dma.hbm_to_vmem [thread:$0]  %s1, 384, %s29, [#allocation4], 128, 128, 8
    $region9: #{rnn_forward.1} parent=1 // pred_fallthru
      _
    // Predicated region
    $region10: #{rnn_forward.1} parent=1 // pred_check
      _
    $region11: #{rnn_forward.1} parent=1 // pred_check_branch
      %36 = sbr.rel (0) target = $region13
    $region12: #{rnn_forward.1} parent=1 // pred_region
      %s38 = ssub.s32 48, 48
      %39 = vsyncadd [#allocation6], %s38
      %s40 = sshll.u32 [#allocation5], 4
      %s41 = int_to_ptr.vmem [resolvable:$true] %s40
      %46 = dma.hbm_to_vmem [thread:$0]  %s2, 48, %s41, [#allocation6], 16, 16, 1
    $region13: #{rnn_forward.1} parent=1 // pred_fallthru
      _
    // Predicated region
    $region14: #{rnn_forward.1} parent=1 // pred_check
      _
    $region15: #{rnn_forward.1} parent=1 // pred_check_branch
      %48 = sbr.rel (0) target = $region17
    $region16: #{rnn_forward.1} parent=1 // pred_region
      %s50 = ssub.s32 768, 768
      %51 = vsyncadd [#allocation6], %s50
      %s52 = sshll.u32 [#allocation7], 4
      %s53 = int_to_ptr.vmem [resolvable:$true] %s52
      %58 = dma.hbm_to_vmem [thread:$0]  %s3, 768, %s53, [#allocation6], 128, 128, 8
    $region17: #{rnn_forward.1} parent=1 // pred_fallthru
      _
    // Predicated region
    $region18: #{rnn_forward.1} parent=1 // pred_check
      _
    $region19: #{rnn_forward.1} parent=1 // pred_check_branch
      %60 = sbr.rel (0) target = $region21
    $region20: #{rnn_forward.1} parent=1 // pred_region
      %s62 = ssub.s32 48, 48
      %63 = vsyncadd [#allocation9], %s62
      %s64 = sshll.u32 [#allocation8], 4
      %s65 = int_to_ptr.vmem [resolvable:$true] %s64
      %70 = dma.hbm_to_vmem [thread:$0]  %s4, 48, %s65, [#allocation9], 16, 16, 1
    $region21: #{rnn_forward.1} parent=1 // pred_fallthru
      _
    // Predicated region
    $region22: #{rnn_forward.1} parent=1 // pred_check
      _
    $region23: #{rnn_forward.1} parent=1 // pred_check_branch
      %72 = sbr.rel (0) target = $region25
    $region24: #{rnn_forward.1} parent=1 // pred_region
      %s74 = ssub.s32 63488, 63488
      %75 = vsyncadd [#allocation9], %s74
      %s76 = sshll.u32 [#allocation10], 4
      %s77 = int_to_ptr.vmem [resolvable:$true] %s76
      %82 = dma.hbm_to_vmem [thread:$0]  %s5, 63488, %s77, [#allocation9], 512, 512, 32
    $region25: #{rnn_forward.1} parent=1 // pred_fallthru
      _
    // Predicated region
    $region26: #{rnn_forward.1} parent=1 // pred_check
      _
    $region27: #{rnn_forward.1} parent=1 // pred_check_branch
      %84 = sbr.rel (0) target = $region29
    $region28: #{rnn_forward.1} parent=1 // pred_region
      %s86 = ssub.s32 64, 64
      %87 = vsyncadd [#allocation12], %s86
      %s89 = sshll.u32 [#allocation11], 4
      %s90 = int_to_ptr.vmem [resolvable:$true] %s89
      %92 = dma.hbm_to_vmem [thread:$0]  %s6, 64, %s90, [#allocation12]
    $region29: #{rnn_forward.1} parent=1 // pred_fallthru
      _
    // Predicated region
    $region30: #{rnn_forward.1} parent=1 // pred_check
      _
    $region31: #{rnn_forward.1} parent=1 // pred_check_branch
      %94 = sbr.rel (0) target = $region33
    $region32: #{rnn_forward.1} parent=1 // pred_region
      %s96 = ssub.s32 8192, 8192
      %97 = vsyncadd [#allocation12], %s96
      %s98 = sshll.u32 [#allocation13], 4
      %s99 = int_to_ptr.vmem [resolvable:$true] %s98
      %104 = dma.hbm_to_vmem [thread:$0]  %s7, 8192, %s99, [#allocation12], 128, 128, 8
    $region33: #{rnn_forward.1} parent=1 // pred_fallthru
      _
    // Predicated region
    $region34: #{rnn_forward.1} parent=1 // pred_check
      _
    $region35: #{rnn_forward.1} parent=1 // pred_check_branch
      %106 = sbr.rel (0) target = $region37
    $region36: #{rnn_forward.1} parent=1 // pred_region
      %s108 = ssub.s32 16, 16
      %109 = vsyncadd [#allocation15], %s108
      %s111 = sshll.u32 [#allocation14], 4
      %s112 = int_to_ptr.vmem [resolvable:$true] %s111
      %114 = dma.hbm_to_vmem [thread:$0]  %s8, 16, %s112, [#allocation15]
    $region37: #{rnn_forward.1} parent=1 // pred_fallthru
      _
    // Predicated region
    $region38: #{rnn_forward.1} parent=1 // pred_check
      _
    $region39: #{rnn_forward.1} parent=1 // pred_check_branch
      %116 = sbr.rel (0) target = $region41
    $region40: #{rnn_forward.1} parent=1 // pred_region
      %117 = dma.done [#allocation4], 384
    $region41: #{rnn_forward.1} parent=1 // pred_fallthru
      _
    // Predicated region
    $region42: #{rnn_forward.1} parent=1 // pred_check
      _
    $region43: #{rnn_forward.1} parent=1 // pred_check_branch
      %119 = sbr.rel (0) target = $region45
    $region44: #{rnn_forward.1} parent=1 // pred_region
      %120 = dma.done [#allocation6], 48
    $region45: #{rnn_forward.1} parent=1 // pred_fallthru
      _
    // Predicated region
    $region46: #{rnn_forward.1} parent=1 // pred_check
      _
    $region47: #{rnn_forward.1} parent=1 // pred_check_branch
      %122 = sbr.rel (0) target = $region49
    $region48: #{rnn_forward.1} parent=1 // pred_region
      %123 = dma.done [#allocation6], 768
    $region49: #{rnn_forward.1} parent=1 // pred_fallthru
      _
    // Predicated region
    $region50: #{rnn_forward.1} parent=1 // pred_check
      _
    $region51: #{rnn_forward.1} parent=1 // pred_check_branch
      %125 = sbr.rel (0) target = $region53
    $region52: #{rnn_forward.1} parent=1 // pred_region
      %126 = dma.done [#allocation9], 48
    $region53: #{rnn_forward.1} parent=1 // pred_fallthru
      _
    // Predicated region
    $region54: #{rnn_forward.1} parent=1 // pred_check
      _
    $region55: #{rnn_forward.1} parent=1 // pred_check_branch
      %128 = sbr.rel (0) target = $region57
    $region56: #{rnn_forward.1} parent=1 // pred_region
      %129 = dma.done [#allocation9], 63488
    $region57: #{rnn_forward.1} parent=1 // pred_fallthru
      _
    // Predicated region
    $region58: #{rnn_forward.1} parent=1 // pred_check
      _
    $region59: #{rnn_forward.1} parent=1 // pred_check_branch
      %131 = sbr.rel (0) target = $region61
    $region60: #{rnn_forward.1} parent=1 // pred_region
      %132 = dma.done [#allocation12], 64
    $region61: #{rnn_forward.1} parent=1 // pred_fallthru
      _
    // Predicated region
    $region62: #{rnn_forward.1} parent=1 // pred_check
      _
    $region63: #{rnn_forward.1} parent=1 // pred_check_branch
      %134 = sbr.rel (0) target = $region65
    $region64: #{rnn_forward.1} parent=1 // pred_region
      %135 = dma.done [#allocation12], 8192
    $region65: #{rnn_forward.1} parent=1 // pred_fallthru
      _
    // Predicated region
    $region66: #{rnn_forward.1} parent=1 // pred_check
      _
    $region67: #{rnn_forward.1} parent=1 // pred_check_branch
      %137 = sbr.rel (0) target = $region69
    $region68: #{rnn_forward.1} parent=1 // pred_region
      %138 = dma.done [#allocation15], 16
    $region69: #{rnn_forward.1} parent=1 // pred_fallthru
      _
    %v139 = vld [vmem:[#allocation3] sm:$0xff]
    %s140 = scalar_lea.vmem [#allocation3], 8
    %v141 = vld [vmem:[%s140] sm:$0xff]
    %s142 = scalar_lea.vmem [#allocation3], 16
    %v143 = vld [vmem:[%s142] sm:$0xff]
    %v144 = vld [vmem:[#allocation7] sm:$0xff]
    %v145 = vld [vmem:[#allocation7 + $0x8] sm:$0xff]
    %s146 = scalar_lea.vmem [#allocation7], 16
    %v147 = vld [vmem:[%s146] sm:$0xff]
    %v148 = vld [vmem:[%s146 + $0x8] sm:$0xff]
    %s149 = scalar_lea.vmem [#allocation7], 32
    %v150 = vld [vmem:[%s149] sm:$0xff]
    %v151 = vld [vmem:[%s149 + $0x8] sm:$0xff]
    %v152 = vld [vmem:[#allocation5] sm:$0x1]
    %s153 = scalar_lea.vmem [#allocation5], 1
    %v154 = vld [vmem:[%s153] sm:$0x1]
    %s155 = scalar_lea.vmem [#allocation5], 2
    %v156 = vld [vmem:[%s155] sm:$0x1]
    %v157 = vld [vmem:[#allocation8] sm:$0x1]
    %s158 = scalar_lea.vmem [#allocation8], 1
    %v159 = vld [vmem:[%s158] sm:$0x1]
    %s160 = scalar_lea.vmem [#allocation8], 2
    %v161 = vld [vmem:[%s160] sm:$0x1]
    %162 = vst [vmem:[#allocation2] sm:$0xff] 0.0
    %163 = vst [vmem:[#allocation2 + $0x8] sm:$0xff] 0.0
    %164 = vst [vmem:[#allocation2 + $0x10] sm:$0xff] 0.0
    %165 = vst [vmem:[#allocation2 + $0x18] sm:$0xff] 0.0
    loop: start=0, step=1, limit=62
    $region70: #{rnn_forward.1} parent=1 // loop_pre_header
      _
    $region71: #{rnn_forward.1} parent=1 // loop_header
      %s167 = sphi 0, %s171
      %p168 = scmp.ge.s32.totalorder %s167, 62
      %v172 = vphi 0.0, %v662
    $region72: #{rnn_forward.1} parent=1 // loop_header_branch
      %170 = sbr.rel (%p168) target = $region76
    $region73: #{rnn_forward.1} parent=1 // loop_body
      %s173 = smul.u32 %s167, 8
      %s174 = scalar_lea.vmem %s0, %s173
      %v175 = vld [vmem:[%s174] sm:$0xff]
      %v177 = vlaneseq
      %v178 = vshrl.u32 %v177, 7
      %v179 = vsub.s32 0, %v178
      %v180 = vrot.slane %v152, %v179
      %vm182 = vcmask 64512
      %v184 = vsel %vm182, %v175, 0
      %186 = vmatprep.subr.mxu0 0.0
      %187 = vmatpush1.msra.mxu0 0.0
      %188 = vmatprep.subr.mxu0 0.0
      %189 = vmatpush1.msra.mxu0 0.0
      %190 = vmatprep.subr.mxu0 0.0
      %191 = vmatpush1.msra.mxu0 0.0
      %192 = vmatprep.subr.mxu0 0.0
      %193 = vmatpush1.msra.mxu0 0.0
      %194 = vmatprep.subr.mxu0 0.0
      %195 = vmatpush1.msra.mxu0 0.0
      %196 = vmatprep.subr.mxu0 0.0
      %197 = vmatpush1.msra.mxu0 0.0
      %198 = vmatprep.subr.mxu0 0.0
      %199 = vmatpush1.msra.mxu0 0.0
      %200 = vmatprep.subr.mxu0 0.0
      %201 = vmatpush1.msra.mxu0 0.0
      %202 = vmatprep.subr.mxu0 0.0
      %203 = vmatpush1.msra.mxu0 0.0
      %204 = vmatprep.subr.mxu0 0.0
      %205 = vmatpush1.msra.mxu0 0.0
      %206 = vmatprep.subr.mxu0 0.0
      %207 = vmatpush1.msra.mxu0 0.0
      %208 = vmatprep.subr.mxu0 0.0
      %209 = vmatpush1.msra.mxu0 0.0
      %210 = vmatprep.subr.mxu0 0.0
      %211 = vmatpush1.msra.mxu0 0.0
      %212 = vmatprep.subr.mxu0 0.0
      %213 = vmatpush1.msra.mxu0 0.0
      %214 = vmatprep.subr.mxu0 0.0
      %215 = vmatpush1.msra.mxu0 0.0
      %216 = vmatprep.subr.mxu0 0.0
      %217 = vmatpush1.msra.mxu0 %v139
      %218 = vmatprep.subr.mxu0 0.0
      %219 = vmatpush2.msra.mxu0 0.0
      %220 = vmatprep.subr.mxu0 0.0
      %221 = vmatpush2.msra.mxu0 0.0
      %222 = vmatprep.subr.mxu0 0.0
      %223 = vmatpush2.msra.mxu0 0.0
      %224 = vmatprep.subr.mxu0 0.0
      %225 = vmatpush2.msra.mxu0 0.0
      %226 = vmatprep.subr.mxu0 0.0
      %227 = vmatpush2.msra.mxu0 0.0
      %228 = vmatprep.subr.mxu0 0.0
      %229 = vmatpush2.msra.mxu0 0.0
      %230 = vmatprep.subr.mxu0 0.0
      %231 = vmatpush2.msra.mxu0 0.0
      %232 = vmatprep.subr.mxu0 0.0
      %233 = vmatpush2.msra.mxu0 0.0
      %234 = vmatprep.subr.mxu0 0.0
      %235 = vmatpush2.msra.mxu0 0.0
      %236 = vmatprep.subr.mxu0 0.0
      %237 = vmatpush2.msra.mxu0 0.0
      %238 = vmatprep.subr.mxu0 0.0
      %239 = vmatpush2.msra.mxu0 0.0
      %240 = vmatprep.subr.mxu0 0.0
      %241 = vmatpush2.msra.mxu0 0.0
      %242 = vmatprep.subr.mxu0 0.0
      %243 = vmatpush2.msra.mxu0 0.0
      %244 = vmatprep.subr.mxu0 0.0
      %245 = vmatpush2.msra.mxu0 0.0
      %246 = vmatprep.subr.mxu0 0.0
      %247 = vmatpush2.msra.mxu0 0.0
      %248 = vmatprep.subr.mxu0 0.0
      %249 = vmatpush2.msra.mxu0 0.0
      %250 = vmatprep.mubr.f32.mxu0 0.0
      %251 = vmatmul.mubr.f32.gmra.mxu0 %v184
      %v252 = vpop.f32.mrf.mxu0
      %v253 = vadd.f32 %v180, %v252
      %v254 = vpop.f32.mrf.mxu0
      %255 = vdwg.mxu0
      %vm256 = vcmask 130048
      %v258 = vsel %vm256, %v172, 0
      %260 = vmatprep.subr.mxu0 0.0
      %261 = vmatpush1.msra.mxu0 0.0
      %262 = vmatprep.subr.mxu0 0.0
      %263 = vmatpush1.msra.mxu0 0.0
      %264 = vmatprep.subr.mxu0 0.0
      %265 = vmatpush1.msra.mxu0 0.0
      %266 = vmatprep.subr.mxu0 0.0
      %267 = vmatpush1.msra.mxu0 0.0
      %268 = vmatprep.subr.mxu0 0.0
      %269 = vmatpush1.msra.mxu0 0.0
      %270 = vmatprep.subr.mxu0 0.0
      %271 = vmatpush1.msra.mxu0 0.0
      %272 = vmatprep.subr.mxu0 0.0
      %273 = vmatpush1.msra.mxu0 0.0
      %274 = vmatprep.subr.mxu0 0.0
      %275 = vmatpush1.msra.mxu0 0.0
      %276 = vmatprep.subr.mxu0 0.0
      %277 = vmatpush1.msra.mxu0 0.0
      %278 = vmatprep.subr.mxu0 0.0
      %279 = vmatpush1.msra.mxu0 0.0
      %280 = vmatprep.subr.mxu0 0.0
      %281 = vmatpush1.msra.mxu0 0.0
      %282 = vmatprep.subr.mxu0 0.0
      %283 = vmatpush1.msra.mxu0 0.0
      %284 = vmatprep.subr.mxu0 0.0
      %285 = vmatpush1.msra.mxu0 0.0
      %286 = vmatprep.subr.mxu0 0.0
      %287 = vmatpush1.msra.mxu0 0.0
      %288 = vmatprep.subr.mxu0 0.0
      %289 = vmatpush1.msra.mxu0 %v145
      %290 = vmatprep.subr.mxu0 0.0
      %291 = vmatpush1.msra.mxu0 %v144
      %292 = vmatprep.subr.mxu0 0.0
      %293 = vmatpush2.msra.mxu0 0.0
      %294 = vmatprep.subr.mxu0 0.0
      %295 = vmatpush2.msra.mxu0 0.0
      %296 = vmatprep.subr.mxu0 0.0
      %297 = vmatpush2.msra.mxu0 0.0
      %298 = vmatprep.subr.mxu0 0.0
      %299 = vmatpush2.msra.mxu0 0.0
      %300 = vmatprep.subr.mxu0 0.0
      %301 = vmatpush2.msra.mxu0 0.0
      %302 = vmatprep.subr.mxu0 0.0
      %303 = vmatpush2.msra.mxu0 0.0
      %304 = vmatprep.subr.mxu0 0.0
      %305 = vmatpush2.msra.mxu0 0.0
      %306 = vmatprep.subr.mxu0 0.0
      %307 = vmatpush2.msra.mxu0 0.0
      %308 = vmatprep.subr.mxu0 0.0
      %309 = vmatpush2.msra.mxu0 0.0
      %310 = vmatprep.subr.mxu0 0.0
      %311 = vmatpush2.msra.mxu0 0.0
      %312 = vmatprep.subr.mxu0 0.0
      %313 = vmatpush2.msra.mxu0 0.0
      %314 = vmatprep.subr.mxu0 0.0
      %315 = vmatpush2.msra.mxu0 0.0
      %316 = vmatprep.subr.mxu0 0.0
      %317 = vmatpush2.msra.mxu0 0.0
      %318 = vmatprep.subr.mxu0 0.0
      %319 = vmatpush2.msra.mxu0 0.0
      %320 = vmatprep.subr.mxu0 0.0
      %321 = vmatpush2.msra.mxu0 0.0
      %322 = vmatprep.subr.mxu0 0.0
      %323 = vmatpush2.msra.mxu0 0.0
      %324 = vmatprep.mubr.f32.mxu0 0.0
      %325 = vmatmul.mubr.f32.gmra.mxu0 %v258
      %v326 = vpop.f32.mrf.mxu0
      %v327 = vadd.f32 0.0, %v326
      %v328 = vpop.f32.mrf.mxu0
      %329 = vdwg.mxu0
      %v330 = vadd.f32 %v253, %v327
      %v332 = vlaneseq
      %v333 = vshrl.u32 %v332, 7
      %v334 = vsub.s32 0, %v333
      %v335 = vrot.slane %v157, %v334
      %v337 = vadd.f32 %v330, %v335
      %v338 = vsub.f32 0.0, %v337
      %v339 = vmul.f32 %v338, 1.442695
      %v340 = vpow.pop %v339
      %v341 = vadd.f32 %v340, 1.0
      %v342 = vrcp.pop %v341
      %v343 = vmul.f32 1.0, %v342
      %v345 = vlaneseq
      %v346 = vshrl.u32 %v345, 7
      %v347 = vsub.s32 0, %v346
      %v348 = vrot.slane %v154, %v347
      %350 = vmatprep.subr.mxu0 0.0
      %351 = vmatpush1.msra.mxu0 0.0
      %352 = vmatprep.subr.mxu0 0.0
      %353 = vmatpush1.msra.mxu0 0.0
      %354 = vmatprep.subr.mxu0 0.0
      %355 = vmatpush1.msra.mxu0 0.0
      %356 = vmatprep.subr.mxu0 0.0
      %357 = vmatpush1.msra.mxu0 0.0
      %358 = vmatprep.subr.mxu0 0.0
      %359 = vmatpush1.msra.mxu0 0.0
      %360 = vmatprep.subr.mxu0 0.0
      %361 = vmatpush1.msra.mxu0 0.0
      %362 = vmatprep.subr.mxu0 0.0
      %363 = vmatpush1.msra.mxu0 0.0
      %364 = vmatprep.subr.mxu0 0.0
      %365 = vmatpush1.msra.mxu0 0.0
      %366 = vmatprep.subr.mxu0 0.0
      %367 = vmatpush1.msra.mxu0 0.0
      %368 = vmatprep.subr.mxu0 0.0
      %369 = vmatpush1.msra.mxu0 0.0
      %370 = vmatprep.subr.mxu0 0.0
      %371 = vmatpush1.msra.mxu0 0.0
      %372 = vmatprep.subr.mxu0 0.0
      %373 = vmatpush1.msra.mxu0 0.0
      %374 = vmatprep.subr.mxu0 0.0
      %375 = vmatpush1.msra.mxu0 0.0
      %376 = vmatprep.subr.mxu0 0.0
      %377 = vmatpush1.msra.mxu0 0.0
      %378 = vmatprep.subr.mxu0 0.0
      %379 = vmatpush1.msra.mxu0 0.0
      %380 = vmatprep.subr.mxu0 0.0
      %381 = vmatpush1.msra.mxu0 %v141
      %382 = vmatprep.subr.mxu0 0.0
      %383 = vmatpush2.msra.mxu0 0.0
      %384 = vmatprep.subr.mxu0 0.0
      %385 = vmatpush2.msra.mxu0 0.0
      %386 = vmatprep.subr.mxu0 0.0
      %387 = vmatpush2.msra.mxu0 0.0
      %388 = vmatprep.subr.mxu0 0.0
      %389 = vmatpush2.msra.mxu0 0.0
      %390 = vmatprep.subr.mxu0 0.0
      %391 = vmatpush2.msra.mxu0 0.0
      %392 = vmatprep.subr.mxu0 0.0
      %393 = vmatpush2.msra.mxu0 0.0
      %394 = vmatprep.subr.mxu0 0.0
      %395 = vmatpush2.msra.mxu0 0.0
      %396 = vmatprep.subr.mxu0 0.0
      %397 = vmatpush2.msra.mxu0 0.0
      %398 = vmatprep.subr.mxu0 0.0
      %399 = vmatpush2.msra.mxu0 0.0
      %400 = vmatprep.subr.mxu0 0.0
      %401 = vmatpush2.msra.mxu0 0.0
      %402 = vmatprep.subr.mxu0 0.0
      %403 = vmatpush2.msra.mxu0 0.0
      %404 = vmatprep.subr.mxu0 0.0
      %405 = vmatpush2.msra.mxu0 0.0
      %406 = vmatprep.subr.mxu0 0.0
      %407 = vmatpush2.msra.mxu0 0.0
      %408 = vmatprep.subr.mxu0 0.0
      %409 = vmatpush2.msra.mxu0 0.0
      %410 = vmatprep.subr.mxu0 0.0
      %411 = vmatpush2.msra.mxu0 0.0
      %412 = vmatprep.subr.mxu0 0.0
      %413 = vmatpush2.msra.mxu0 0.0
      %414 = vmatprep.mubr.f32.mxu0 0.0
      %415 = vmatmul.mubr.f32.gmra.mxu0 %v184
      %v416 = vpop.f32.mrf.mxu0
      %v417 = vadd.f32 %v348, %v416
      %v418 = vpop.f32.mrf.mxu0
      %419 = vdwg.mxu0
      %420 = vmatprep.subr.mxu0 0.0
      %421 = vmatpush1.msra.mxu0 0.0
      %422 = vmatprep.subr.mxu0 0.0
      %423 = vmatpush1.msra.mxu0 0.0
      %424 = vmatprep.subr.mxu0 0.0
      %425 = vmatpush1.msra.mxu0 0.0
      %426 = vmatprep.subr.mxu0 0.0
      %427 = vmatpush1.msra.mxu0 0.0
      %428 = vmatprep.subr.mxu0 0.0
      %429 = vmatpush1.msra.mxu0 0.0
      %430 = vmatprep.subr.mxu0 0.0
      %431 = vmatpush1.msra.mxu0 0.0
      %432 = vmatprep.subr.mxu0 0.0
      %433 = vmatpush1.msra.mxu0 0.0
      %434 = vmatprep.subr.mxu0 0.0
      %435 = vmatpush1.msra.mxu0 0.0
      %436 = vmatprep.subr.mxu0 0.0
      %437 = vmatpush1.msra.mxu0 0.0
      %438 = vmatprep.subr.mxu0 0.0
      %439 = vmatpush1.msra.mxu0 0.0
      %440 = vmatprep.subr.mxu0 0.0
      %441 = vmatpush1.msra.mxu0 0.0
      %442 = vmatprep.subr.mxu0 0.0
      %443 = vmatpush1.msra.mxu0 0.0
      %444 = vmatprep.subr.mxu0 0.0
      %445 = vmatpush1.msra.mxu0 0.0
      %446 = vmatprep.subr.mxu0 0.0
      %447 = vmatpush1.msra.mxu0 0.0
      %448 = vmatprep.subr.mxu0 0.0
      %449 = vmatpush1.msra.mxu0 %v148
      %450 = vmatprep.subr.mxu0 0.0
      %451 = vmatpush1.msra.mxu0 %v147
      %452 = vmatprep.subr.mxu0 0.0
      %453 = vmatpush2.msra.mxu0 0.0
      %454 = vmatprep.subr.mxu0 0.0
      %455 = vmatpush2.msra.mxu0 0.0
      %456 = vmatprep.subr.mxu0 0.0
      %457 = vmatpush2.msra.mxu0 0.0
      %458 = vmatprep.subr.mxu0 0.0
      %459 = vmatpush2.msra.mxu0 0.0
      %460 = vmatprep.subr.mxu0 0.0
      %461 = vmatpush2.msra.mxu0 0.0
      %462 = vmatprep.subr.mxu0 0.0
      %463 = vmatpush2.msra.mxu0 0.0
      %464 = vmatprep.subr.mxu0 0.0
      %465 = vmatpush2.msra.mxu0 0.0
      %466 = vmatprep.subr.mxu0 0.0
      %467 = vmatpush2.msra.mxu0 0.0
      %468 = vmatprep.subr.mxu0 0.0
      %469 = vmatpush2.msra.mxu0 0.0
      %470 = vmatprep.subr.mxu0 0.0
      %471 = vmatpush2.msra.mxu0 0.0
      %472 = vmatprep.subr.mxu0 0.0
      %473 = vmatpush2.msra.mxu0 0.0
      %474 = vmatprep.subr.mxu0 0.0
      %475 = vmatpush2.msra.mxu0 0.0
      %476 = vmatprep.subr.mxu0 0.0
      %477 = vmatpush2.msra.mxu0 0.0
      %478 = vmatprep.subr.mxu0 0.0
      %479 = vmatpush2.msra.mxu0 0.0
      %480 = vmatprep.subr.mxu0 0.0
      %481 = vmatpush2.msra.mxu0 0.0
      %482 = vmatprep.subr.mxu0 0.0
      %483 = vmatpush2.msra.mxu0 0.0
      %484 = vmatprep.mubr.f32.mxu0 0.0
      %485 = vmatmul.mubr.f32.gmra.mxu0 %v258
      %v486 = vpop.f32.mrf.mxu0
      %v487 = vadd.f32 0.0, %v486
      %v488 = vpop.f32.mrf.mxu0
      %489 = vdwg.mxu0
      %v490 = vadd.f32 %v417, %v487
      %v492 = vlaneseq
      %v493 = vshrl.u32 %v492, 7
      %v494 = vsub.s32 0, %v493
      %v495 = vrot.slane %v159, %v494
      %v497 = vadd.f32 %v490, %v495
      %v498 = vsub.f32 0.0, %v497
      %v499 = vmul.f32 %v498, 1.442695
      %v500 = vpow.pop %v499
      %v501 = vadd.f32 %v500, 1.0
      %v502 = vrcp.pop %v501
      %v503 = vmul.f32 1.0, %v502
      %v505 = vlaneseq
      %v506 = vshrl.u32 %v505, 7
      %v507 = vsub.s32 0, %v506
      %v508 = vrot.slane %v156, %v507
      %510 = vmatprep.subr.mxu0 0.0
      %511 = vmatpush1.msra.mxu0 0.0
      %512 = vmatprep.subr.mxu0 0.0
      %513 = vmatpush1.msra.mxu0 0.0
      %514 = vmatprep.subr.mxu0 0.0
      %515 = vmatpush1.msra.mxu0 0.0
      %516 = vmatprep.subr.mxu0 0.0
      %517 = vmatpush1.msra.mxu0 0.0
      %518 = vmatprep.subr.mxu0 0.0
      %519 = vmatpush1.msra.mxu0 0.0
      %520 = vmatprep.subr.mxu0 0.0
      %521 = vmatpush1.msra.mxu0 0.0
      %522 = vmatprep.subr.mxu0 0.0
      %523 = vmatpush1.msra.mxu0 0.0
      %524 = vmatprep.subr.mxu0 0.0
      %525 = vmatpush1.msra.mxu0 0.0
      %526 = vmatprep.subr.mxu0 0.0
      %527 = vmatpush1.msra.mxu0 0.0
      %528 = vmatprep.subr.mxu0 0.0
      %529 = vmatpush1.msra.mxu0 0.0
      %530 = vmatprep.subr.mxu0 0.0
      %531 = vmatpush1.msra.mxu0 0.0
      %532 = vmatprep.subr.mxu0 0.0
      %533 = vmatpush1.msra.mxu0 0.0
      %534 = vmatprep.subr.mxu0 0.0
      %535 = vmatpush1.msra.mxu0 0.0
      %536 = vmatprep.subr.mxu0 0.0
      %537 = vmatpush1.msra.mxu0 0.0
      %538 = vmatprep.subr.mxu0 0.0
      %539 = vmatpush1.msra.mxu0 0.0
      %540 = vmatprep.subr.mxu0 0.0
      %541 = vmatpush1.msra.mxu0 %v143
      %542 = vmatprep.subr.mxu0 0.0
      %543 = vmatpush2.msra.mxu0 0.0
      %544 = vmatprep.subr.mxu0 0.0
      %545 = vmatpush2.msra.mxu0 0.0
      %546 = vmatprep.subr.mxu0 0.0
      %547 = vmatpush2.msra.mxu0 0.0
      %548 = vmatprep.subr.mxu0 0.0
      %549 = vmatpush2.msra.mxu0 0.0
      %550 = vmatprep.subr.mxu0 0.0
      %551 = vmatpush2.msra.mxu0 0.0
      %552 = vmatprep.subr.mxu0 0.0
      %553 = vmatpush2.msra.mxu0 0.0
      %554 = vmatprep.subr.mxu0 0.0
      %555 = vmatpush2.msra.mxu0 0.0
      %556 = vmatprep.subr.mxu0 0.0
      %557 = vmatpush2.msra.mxu0 0.0
      %558 = vmatprep.subr.mxu0 0.0
      %559 = vmatpush2.msra.mxu0 0.0
      %560 = vmatprep.subr.mxu0 0.0
      %561 = vmatpush2.msra.mxu0 0.0
      %562 = vmatprep.subr.mxu0 0.0
      %563 = vmatpush2.msra.mxu0 0.0
      %564 = vmatprep.subr.mxu0 0.0
      %565 = vmatpush2.msra.mxu0 0.0
      %566 = vmatprep.subr.mxu0 0.0
      %567 = vmatpush2.msra.mxu0 0.0
      %568 = vmatprep.subr.mxu0 0.0
      %569 = vmatpush2.msra.mxu0 0.0
      %570 = vmatprep.subr.mxu0 0.0
      %571 = vmatpush2.msra.mxu0 0.0
      %572 = vmatprep.subr.mxu0 0.0
      %573 = vmatpush2.msra.mxu0 0.0
      %574 = vmatprep.mubr.f32.mxu0 0.0
      %575 = vmatmul.mubr.f32.gmra.mxu0 %v184
      %v576 = vpop.f32.mrf.mxu0
      %v577 = vadd.f32 %v508, %v576
      %v578 = vpop.f32.mrf.mxu0
      %579 = vdwg.mxu0
      %v581 = vlaneseq
      %v582 = vshrl.u32 %v581, 7
      %v583 = vsub.s32 0, %v582
      %v584 = vrot.slane %v161, %v583
      %586 = vmatprep.subr.mxu0 0.0
      %587 = vmatpush1.msra.mxu0 0.0
      %588 = vmatprep.subr.mxu0 0.0
      %589 = vmatpush1.msra.mxu0 0.0
      %590 = vmatprep.subr.mxu0 0.0
      %591 = vmatpush1.msra.mxu0 0.0
      %592 = vmatprep.subr.mxu0 0.0
      %593 = vmatpush1.msra.mxu0 0.0
      %594 = vmatprep.subr.mxu0 0.0
      %595 = vmatpush1.msra.mxu0 0.0
      %596 = vmatprep.subr.mxu0 0.0
      %597 = vmatpush1.msra.mxu0 0.0
      %598 = vmatprep.subr.mxu0 0.0
      %599 = vmatpush1.msra.mxu0 0.0
      %600 = vmatprep.subr.mxu0 0.0
      %601 = vmatpush1.msra.mxu0 0.0
      %602 = vmatprep.subr.mxu0 0.0
      %603 = vmatpush1.msra.mxu0 0.0
      %604 = vmatprep.subr.mxu0 0.0
      %605 = vmatpush1.msra.mxu0 0.0
      %606 = vmatprep.subr.mxu0 0.0
      %607 = vmatpush1.msra.mxu0 0.0
      %608 = vmatprep.subr.mxu0 0.0
      %609 = vmatpush1.msra.mxu0 0.0
      %610 = vmatprep.subr.mxu0 0.0
      %611 = vmatpush1.msra.mxu0 0.0
      %612 = vmatprep.subr.mxu0 0.0
      %613 = vmatpush1.msra.mxu0 0.0
      %614 = vmatprep.subr.mxu0 0.0
      %615 = vmatpush1.msra.mxu0 %v151
      %616 = vmatprep.subr.mxu0 0.0
      %617 = vmatpush1.msra.mxu0 %v150
      %618 = vmatprep.subr.mxu0 0.0
      %619 = vmatpush2.msra.mxu0 0.0
      %620 = vmatprep.subr.mxu0 0.0
      %621 = vmatpush2.msra.mxu0 0.0
      %622 = vmatprep.subr.mxu0 0.0
      %623 = vmatpush2.msra.mxu0 0.0
      %624 = vmatprep.subr.mxu0 0.0
      %625 = vmatpush2.msra.mxu0 0.0
      %626 = vmatprep.subr.mxu0 0.0
      %627 = vmatpush2.msra.mxu0 0.0
      %628 = vmatprep.subr.mxu0 0.0
      %629 = vmatpush2.msra.mxu0 0.0
      %630 = vmatprep.subr.mxu0 0.0
      %631 = vmatpush2.msra.mxu0 0.0
      %632 = vmatprep.subr.mxu0 0.0
      %633 = vmatpush2.msra.mxu0 0.0
      %634 = vmatprep.subr.mxu0 0.0
      %635 = vmatpush2.msra.mxu0 0.0
      %636 = vmatprep.subr.mxu0 0.0
      %637 = vmatpush2.msra.mxu0 0.0
      %638 = vmatprep.subr.mxu0 0.0
      %639 = vmatpush2.msra.mxu0 0.0
      %640 = vmatprep.subr.mxu0 0.0
      %641 = vmatpush2.msra.mxu0 0.0
      %642 = vmatprep.subr.mxu0 0.0
      %643 = vmatpush2.msra.mxu0 0.0
      %644 = vmatprep.subr.mxu0 0.0
      %645 = vmatpush2.msra.mxu0 0.0
      %646 = vmatprep.subr.mxu0 0.0
      %647 = vmatpush2.msra.mxu0 0.0
      %648 = vmatprep.subr.mxu0 0.0
      %649 = vmatpush2.msra.mxu0 0.0
      %650 = vmatprep.mubr.f32.mxu0 0.0
      %651 = vmatmul.mubr.f32.gmra.mxu0 %v258
      %v652 = vpop.f32.mrf.mxu0
      %v653 = vadd.f32 %v584, %v652
      %v654 = vpop.f32.mrf.mxu0
      %655 = vdwg.mxu0
      %v656 = vmul.f32 %v343, %v653
      %v657 = vadd.f32 %v577, %v656
      %v658 = vtanh.pop %v657
      %v659 = vsub.f32 1.0, %v503
      %v660 = vmul.f32 %v659, %v658
      %v661 = vmul.f32 %v503, %v172
      %v662 = vadd.f32 %v660, %v661
      %s663 = scalar_lea.vmem %s10, %s173
      %664 = vst.msk [vmem:[%s663] sm:$0xff] %vm256, %v662
      %v665 = vld [vmem:[#allocation2] sm:$0xff]
      %v666 = vld [vmem:[#allocation2 + $0x8] sm:$0xff]
      %v667 = vld [vmem:[#allocation2 + $0x10] sm:$0xff]
      %v668 = vld [vmem:[#allocation2 + $0x18] sm:$0xff]
      %s669 = smul.addr %s173, 8
      %s670 = scalar_lea.vmem [#allocation10], %s669
      %v671 = vld [vmem:[%s670] sm:$0xff]
      %v672 = vld [vmem:[%s670 + $0x8] sm:$0xff]
      %v673 = vld [vmem:[%s670 + $0x10] sm:$0xff]
      %v674 = vld [vmem:[%s670 + $0x18] sm:$0xff]
      %v675 = vld [vmem:[%s670 + $0x20] sm:$0xff]
      %v676 = vld [vmem:[%s670 + $0x28] sm:$0xff]
      %v677 = vld [vmem:[%s670 + $0x30] sm:$0xff]
      %v678 = vld [vmem:[%s670 + $0x38] sm:$0xff]
      %v680 = vsel %vm256, %v662, 0
      %682 = vmatprep.subr.mxu0 0.0
      %683 = vmatpush1.msra.mxu0 0.0
      %684 = vmatprep.subr.mxu0 0.0
      %685 = vmatpush1.msra.mxu0 0.0
      %686 = vmatprep.subr.mxu0 0.0
      %687 = vmatpush1.msra.mxu0 0.0
      %688 = vmatprep.subr.mxu0 0.0
      %689 = vmatpush1.msra.mxu0 0.0
      %690 = vmatprep.subr.mxu0 0.0
      %691 = vmatpush1.msra.mxu0 0.0
      %692 = vmatprep.subr.mxu0 0.0
      %693 = vmatpush1.msra.mxu0 0.0
      %694 = vmatprep.subr.mxu0 0.0
      %695 = vmatpush1.msra.mxu0 0.0
      %696 = vmatprep.subr.mxu0 0.0
      %697 = vmatpush1.msra.mxu0 0.0
      %698 = vmatprep.subr.mxu0 0.0
      %699 = vmatpush1.msra.mxu0 0.0
      %700 = vmatprep.subr.mxu0 0.0
      %701 = vmatpush1.msra.mxu0 0.0
      %702 = vmatprep.subr.mxu0 0.0
      %703 = vmatpush1.msra.mxu0 0.0
      %704 = vmatprep.subr.mxu0 0.0
      %705 = vmatpush1.msra.mxu0 0.0
      %706 = vmatprep.subr.mxu0 0.0
      %707 = vmatpush1.msra.mxu0 0.0
      %708 = vmatprep.subr.mxu0 0.0
      %709 = vmatpush1.msra.mxu0 0.0
      %710 = vmatprep.subr.mxu0 %v676
      %711 = vmatpush1.msra.mxu0 %v675
      %712 = vmatprep.subr.mxu0 %v672
      %713 = vmatpush1.msra.mxu0 %v671
      %714 = vmatprep.subr.mxu0 0.0
      %715 = vmatpush2.msra.mxu0 0.0
      %716 = vmatprep.subr.mxu0 0.0
      %717 = vmatpush2.msra.mxu0 0.0
      %718 = vmatprep.subr.mxu0 0.0
      %719 = vmatpush2.msra.mxu0 0.0
      %720 = vmatprep.subr.mxu0 0.0
      %721 = vmatpush2.msra.mxu0 0.0
      %722 = vmatprep.subr.mxu0 0.0
      %723 = vmatpush2.msra.mxu0 0.0
      %724 = vmatprep.subr.mxu0 0.0
      %725 = vmatpush2.msra.mxu0 0.0
      %726 = vmatprep.subr.mxu0 0.0
      %727 = vmatpush2.msra.mxu0 0.0
      %728 = vmatprep.subr.mxu0 0.0
      %729 = vmatpush2.msra.mxu0 0.0
      %730 = vmatprep.subr.mxu0 0.0
      %731 = vmatpush2.msra.mxu0 0.0
      %732 = vmatprep.subr.mxu0 0.0
      %733 = vmatpush2.msra.mxu0 0.0
      %734 = vmatprep.subr.mxu0 0.0
      %735 = vmatpush2.msra.mxu0 0.0
      %736 = vmatprep.subr.mxu0 0.0
      %737 = vmatpush2.msra.mxu0 0.0
      %738 = vmatprep.subr.mxu0 0.0
      %739 = vmatpush2.msra.mxu0 0.0
      %740 = vmatprep.subr.mxu0 0.0
      %741 = vmatpush2.msra.mxu0 0.0
      %742 = vmatprep.subr.mxu0 0.0
      %743 = vmatpush2.msra.mxu0 0.0
      %744 = vmatprep.subr.mxu0 0.0
      %745 = vmatpush2.msra.mxu0 0.0
      %746 = vmatprep.mubr.f32.mxu0 0.0
      %747 = vmatmul.mubr.f32.gmra.mxu0 %v680
      %v748 = vpop.f32.mrf.mxu0
      %v749 = vadd.f32 0.0, %v748
      %v750 = vpop.f32.mrf.mxu0
      %v751 = vadd.f32 0.0, %v750
      %752 = vdwg.mxu0
      %753 = vmatprep.subr.mxu0 0.0
      %754 = vmatpush1.msra.mxu0 0.0
      %755 = vmatprep.subr.mxu0 0.0
      %756 = vmatpush1.msra.mxu0 0.0
      %757 = vmatprep.subr.mxu0 0.0
      %758 = vmatpush1.msra.mxu0 0.0
      %759 = vmatprep.subr.mxu0 0.0
      %760 = vmatpush1.msra.mxu0 0.0
      %761 = vmatprep.subr.mxu0 0.0
      %762 = vmatpush1.msra.mxu0 0.0
      %763 = vmatprep.subr.mxu0 0.0
      %764 = vmatpush1.msra.mxu0 0.0
      %765 = vmatprep.subr.mxu0 0.0
      %766 = vmatpush1.msra.mxu0 0.0
      %767 = vmatprep.subr.mxu0 0.0
      %768 = vmatpush1.msra.mxu0 0.0
      %769 = vmatprep.subr.mxu0 0.0
      %770 = vmatpush1.msra.mxu0 0.0
      %771 = vmatprep.subr.mxu0 0.0
      %772 = vmatpush1.msra.mxu0 0.0
      %773 = vmatprep.subr.mxu0 0.0
      %774 = vmatpush1.msra.mxu0 0.0
      %775 = vmatprep.subr.mxu0 0.0
      %776 = vmatpush1.msra.mxu0 0.0
      %777 = vmatprep.subr.mxu0 0.0
      %778 = vmatpush1.msra.mxu0 0.0
      %779 = vmatprep.subr.mxu0 0.0
      %780 = vmatpush1.msra.mxu0 0.0
      %781 = vmatprep.subr.mxu0 %v678
      %782 = vmatpush1.msra.mxu0 %v677
      %783 = vmatprep.subr.mxu0 %v674
      %784 = vmatpush1.msra.mxu0 %v673
      %785 = vmatprep.subr.mxu0 0.0
      %786 = vmatpush2.msra.mxu0 0.0
      %787 = vmatprep.subr.mxu0 0.0
      %788 = vmatpush2.msra.mxu0 0.0
      %789 = vmatprep.subr.mxu0 0.0
      %790 = vmatpush2.msra.mxu0 0.0
      %791 = vmatprep.subr.mxu0 0.0
      %792 = vmatpush2.msra.mxu0 0.0
      %793 = vmatprep.subr.mxu0 0.0
      %794 = vmatpush2.msra.mxu0 0.0
      %795 = vmatprep.subr.mxu0 0.0
      %796 = vmatpush2.msra.mxu0 0.0
      %797 = vmatprep.subr.mxu0 0.0
      %798 = vmatpush2.msra.mxu0 0.0
      %799 = vmatprep.subr.mxu0 0.0
      %800 = vmatpush2.msra.mxu0 0.0
      %801 = vmatprep.subr.mxu0 0.0
      %802 = vmatpush2.msra.mxu0 0.0
      %803 = vmatprep.subr.mxu0 0.0
      %804 = vmatpush2.msra.mxu0 0.0
      %805 = vmatprep.subr.mxu0 0.0
      %806 = vmatpush2.msra.mxu0 0.0
      %807 = vmatprep.subr.mxu0 0.0
      %808 = vmatpush2.msra.mxu0 0.0
      %809 = vmatprep.subr.mxu0 0.0
      %810 = vmatpush2.msra.mxu0 0.0
      %811 = vmatprep.subr.mxu0 0.0
      %812 = vmatpush2.msra.mxu0 0.0
      %813 = vmatprep.subr.mxu0 0.0
      %814 = vmatpush2.msra.mxu0 0.0
      %815 = vmatprep.subr.mxu0 0.0
      %816 = vmatpush2.msra.mxu0 0.0
      %817 = vmatprep.mubr.f32.mxu0 0.0
      %818 = vmatmul.mubr.f32.gmra.mxu0 %v680
      %v819 = vpop.f32.mrf.mxu0
      %v820 = vadd.f32 0.0, %v819
      %v821 = vpop.f32.mrf.mxu0
      %v822 = vadd.f32 0.0, %v821
      %823 = vdwg.mxu0
      %v824 = vadd.f32 %v665, %v749
      %v825 = vadd.f32 %v666, %v751
      %v826 = vadd.f32 %v667, %v820
      %v827 = vadd.f32 %v668, %v822
      %828 = vst [vmem:[#allocation2] sm:$0xff] %v824
      %829 = vst [vmem:[#allocation2 + $0x8] sm:$0xff] %v825
      %830 = vst [vmem:[#allocation2 + $0x10] sm:$0xff] %v826
      %831 = vst [vmem:[#allocation2 + $0x18] sm:$0xff] %v827
    $region74: #{rnn_forward.1} parent=1 // loop_footer
      %s171 = sadd.s32 1, %s167
    $region75: #{rnn_forward.1} parent=1 // loop_footer_branch
      %166 = sbr.rel target = $region71
    $region76: #{rnn_forward.1} parent=1 // loop_exit
      _
    %v832 = vld [vmem:[#allocation2] sm:$0xff]
    %v833 = vld [vmem:[#allocation2 + $0x8] sm:$0xff]
    %v834 = vld [vmem:[#allocation2 + $0x10] sm:$0xff]
    %v835 = vld [vmem:[#allocation2 + $0x18] sm:$0xff]
    %v836 = vld [vmem:[#allocation11] sm:$0xf]
    %v838 = vlaneseq
    %v839 = vshrl.u32 %v838, 7
    %v840 = vsub.s32 0, %v839
    %v841 = vrot.slane %v836, %v840
    %v842 = vlaneseq
    %v843 = vshrl.u32 %v842, 7
    %v844 = vsub.s32 1, %v843
    %v845 = vrot.slane %v836, %v844
    %v846 = vlaneseq
    %v847 = vshrl.u32 %v846, 7
    %v848 = vsub.s32 2, %v847
    %v849 = vrot.slane %v836, %v848
    %v850 = vlaneseq
    %v851 = vshrl.u32 %v850, 7
    %v852 = vsub.s32 3, %v851
    %v853 = vrot.slane %v836, %v852
    %v858 = vadd.f32 %v832, %v841
    %v859 = vadd.f32 %v833, %v845
    %v860 = vadd.f32 %v834, %v849
    %v861 = vadd.f32 %v835, %v853
    %v862 = vmax.f32 %v858, 0.0
    %v863 = vmax.f32 %v859, 0.0
    %v864 = vmax.f32 %v860, 0.0
    %v865 = vmax.f32 %v861, 0.0
    %v866 = vld [vmem:[#allocation13] sm:$0xff]
    %v867 = vld [vmem:[#allocation13 + $0x8] sm:$0xff]
    %v868 = vld [vmem:[#allocation13 + $0x10] sm:$0xff]
    %v869 = vld [vmem:[#allocation13 + $0x18] sm:$0xff]
    %v870 = vld [vmem:[#allocation13 + $0x20] sm:$0xff]
    %v871 = vld [vmem:[#allocation13 + $0x28] sm:$0xff]
    %v872 = vld [vmem:[#allocation13 + $0x30] sm:$0xff]
    %v873 = vld [vmem:[#allocation13 + $0x38] sm:$0xff]
    %v874 = vld [vmem:[#allocation13 + $0x40] sm:$0xff]
    %v875 = vld [vmem:[#allocation13 + $0x48] sm:$0xff]
    %v876 = vld [vmem:[#allocation13 + $0x50] sm:$0xff]
    %v877 = vld [vmem:[#allocation13 + $0x58] sm:$0xff]
    %v878 = vld [vmem:[#allocation13 + $0x60] sm:$0xff]
    %v879 = vld [vmem:[#allocation13 + $0x68] sm:$0xff]
    %v880 = vld [vmem:[#allocation13 + $0x70] sm:$0xff]
    %v881 = vld [vmem:[#allocation13 + $0x78] sm:$0xff]
    %v882 = vld [vmem:[#allocation13 + $0x80] sm:$0xff]
    %v883 = vld [vmem:[#allocation13 + $0x88] sm:$0xff]
    %v884 = vld [vmem:[#allocation13 + $0x90] sm:$0xff]
    %v885 = vld [vmem:[#allocation13 + $0x98] sm:$0xff]
    %v886 = vld [vmem:[#allocation13 + $0xa0] sm:$0xff]
    %v887 = vld [vmem:[#allocation13 + $0xa8] sm:$0xff]
    %v888 = vld [vmem:[#allocation13 + $0xb0] sm:$0xff]
    %v889 = vld [vmem:[#allocation13 + $0xb8] sm:$0xff]
    %v890 = vld [vmem:[#allocation13 + $0xc0] sm:$0xff]
    %v891 = vld [vmem:[#allocation13 + $0xc8] sm:$0xff]
    %v892 = vld [vmem:[#allocation13 + $0xd0] sm:$0xff]
    %v893 = vld [vmem:[#allocation13 + $0xd8] sm:$0xff]
    %v894 = vld [vmem:[#allocation13 + $0xe0] sm:$0xff]
    %v895 = vld [vmem:[#allocation13 + $0xe8] sm:$0xff]
    %v896 = vld [vmem:[#allocation13 + $0xf0] sm:$0xff]
    %v897 = vld [vmem:[#allocation13 + $0xf8] sm:$0xff]
    %v898 = vld [vmem:[#allocation13 + $0x100] sm:$0xff]
    %v899 = vld [vmem:[#allocation13 + $0x108] sm:$0xff]
    %v900 = vld [vmem:[#allocation13 + $0x110] sm:$0xff]
    %v901 = vld [vmem:[#allocation13 + $0x118] sm:$0xff]
    %v902 = vld [vmem:[#allocation13 + $0x120] sm:$0xff]
    %v903 = vld [vmem:[#allocation13 + $0x128] sm:$0xff]
    %v904 = vld [vmem:[#allocation13 + $0x130] sm:$0xff]
    %v905 = vld [vmem:[#allocation13 + $0x138] sm:$0xff]
    %v906 = vld [vmem:[#allocation13 + $0x140] sm:$0xff]
    %v907 = vld [vmem:[#allocation13 + $0x148] sm:$0xff]
    %v908 = vld [vmem:[#allocation13 + $0x150] sm:$0xff]
    %v909 = vld [vmem:[#allocation13 + $0x158] sm:$0xff]
    %v910 = vld [vmem:[#allocation13 + $0x160] sm:$0xff]
    %v911 = vld [vmem:[#allocation13 + $0x168] sm:$0xff]
    %v912 = vld [vmem:[#allocation13 + $0x170] sm:$0xff]
    %v913 = vld [vmem:[#allocation13 + $0x178] sm:$0xff]
    %v914 = vld [vmem:[#allocation13 + $0x180] sm:$0xff]
    %v915 = vld [vmem:[#allocation13 + $0x188] sm:$0xff]
    %v916 = vld [vmem:[#allocation13 + $0x190] sm:$0xff]
    %v917 = vld [vmem:[#allocation13 + $0x198] sm:$0xff]
    %v918 = vld [vmem:[#allocation13 + $0x1a0] sm:$0xff]
    %v919 = vld [vmem:[#allocation13 + $0x1a8] sm:$0xff]
    %v920 = vld [vmem:[#allocation13 + $0x1b0] sm:$0xff]
    %v921 = vld [vmem:[#allocation13 + $0x1b8] sm:$0xff]
    %v922 = vld [vmem:[#allocation13 + $0x1c0] sm:$0xff]
    %v923 = vld [vmem:[#allocation13 + $0x1c8] sm:$0xff]
    %v924 = vld [vmem:[#allocation13 + $0x1d0] sm:$0xff]
    %v925 = vld [vmem:[#allocation13 + $0x1d8] sm:$0xff]
    %v926 = vld [vmem:[#allocation13 + $0x1e0] sm:$0xff]
    %v927 = vld [vmem:[#allocation13 + $0x1e8] sm:$0xff]
    %v928 = vld [vmem:[#allocation13 + $0x1f0] sm:$0xff]
    %v929 = vld [vmem:[#allocation13 + $0x1f8] sm:$0xff]
    %v930 = vld [vmem:[#allocation14] sm:$0x1]
    %v932 = vlaneseq
    %v933 = vshrl.u32 %v932, 7
    %v934 = vsub.s32 0, %v933
    %v935 = vrot.slane %v930, %v934
    %937 = vmatprep.subr.mxu0 0.0
    %938 = vmatpush1.msra.mxu0 %v881
    %939 = vmatprep.subr.mxu0 0.0
    %940 = vmatpush1.msra.mxu0 %v880
    %941 = vmatprep.subr.mxu0 0.0
    %942 = vmatpush1.msra.mxu0 %v879
    %943 = vmatprep.subr.mxu0 0.0
    %944 = vmatpush1.msra.mxu0 %v878
    %945 = vmatprep.subr.mxu0 0.0
    %946 = vmatpush1.msra.mxu0 %v877
    %947 = vmatprep.subr.mxu0 0.0
    %948 = vmatpush1.msra.mxu0 %v876
    %949 = vmatprep.subr.mxu0 0.0
    %950 = vmatpush1.msra.mxu0 %v875
    %951 = vmatprep.subr.mxu0 0.0
    %952 = vmatpush1.msra.mxu0 %v874
    %953 = vmatprep.subr.mxu0 0.0
    %954 = vmatpush1.msra.mxu0 %v873
    %955 = vmatprep.subr.mxu0 0.0
    %956 = vmatpush1.msra.mxu0 %v872
    %957 = vmatprep.subr.mxu0 0.0
    %958 = vmatpush1.msra.mxu0 %v871
    %959 = vmatprep.subr.mxu0 0.0
    %960 = vmatpush1.msra.mxu0 %v870
    %961 = vmatprep.subr.mxu0 0.0
    %962 = vmatpush1.msra.mxu0 %v869
    %963 = vmatprep.subr.mxu0 0.0
    %964 = vmatpush1.msra.mxu0 %v868
    %965 = vmatprep.subr.mxu0 0.0
    %966 = vmatpush1.msra.mxu0 %v867
    %967 = vmatprep.subr.mxu0 0.0
    %968 = vmatpush1.msra.mxu0 %v866
    %969 = vmatprep.subr.mxu0 0.0
    %970 = vmatpush2.msra.mxu0 %v897
    %971 = vmatprep.subr.mxu0 0.0
    %972 = vmatpush2.msra.mxu0 %v896
    %973 = vmatprep.subr.mxu0 0.0
    %974 = vmatpush2.msra.mxu0 %v895
    %975 = vmatprep.subr.mxu0 0.0
    %976 = vmatpush2.msra.mxu0 %v894
    %977 = vmatprep.subr.mxu0 0.0
    %978 = vmatpush2.msra.mxu0 %v893
    %979 = vmatprep.subr.mxu0 0.0
    %980 = vmatpush2.msra.mxu0 %v892
    %981 = vmatprep.subr.mxu0 0.0
    %982 = vmatpush2.msra.mxu0 %v891
    %983 = vmatprep.subr.mxu0 0.0
    %984 = vmatpush2.msra.mxu0 %v890
    %985 = vmatprep.subr.mxu0 0.0
    %986 = vmatpush2.msra.mxu0 %v889
    %987 = vmatprep.subr.mxu0 0.0
    %988 = vmatpush2.msra.mxu0 %v888
    %989 = vmatprep.subr.mxu0 0.0
    %990 = vmatpush2.msra.mxu0 %v887
    %991 = vmatprep.subr.mxu0 0.0
    %992 = vmatpush2.msra.mxu0 %v886
    %993 = vmatprep.subr.mxu0 0.0
    %994 = vmatpush2.msra.mxu0 %v885
    %995 = vmatprep.subr.mxu0 0.0
    %996 = vmatpush2.msra.mxu0 %v884
    %997 = vmatprep.subr.mxu0 0.0
    %998 = vmatpush2.msra.mxu0 %v883
    %999 = vmatprep.subr.mxu0 0.0
    %1000 = vmatpush2.msra.mxu0 %v882
    %1001 = vmatprep.mubr.f32.mxu0 %v863
    %1002 = vmatmul.mubr.f32.gmra.mxu0 %v862
    %v1003 = vpop.f32.mrf.mxu0
    %v1004 = vadd.f32 %v935, %v1003
    %v1005 = vpop.f32.mrf.mxu0
    %1006 = vdwg.mxu0
    %1007 = vmatprep.subr.mxu0 0.0
    %1008 = vmatpush1.msra.mxu0 %v913
    %1009 = vmatprep.subr.mxu0 0.0
    %1010 = vmatpush1.msra.mxu0 %v912
    %1011 = vmatprep.subr.mxu0 0.0
    %1012 = vmatpush1.msra.mxu0 %v911
    %1013 = vmatprep.subr.mxu0 0.0
    %1014 = vmatpush1.msra.mxu0 %v910
    %1015 = vmatprep.subr.mxu0 0.0
    %1016 = vmatpush1.msra.mxu0 %v909
    %1017 = vmatprep.subr.mxu0 0.0
    %1018 = vmatpush1.msra.mxu0 %v908
    %1019 = vmatprep.subr.mxu0 0.0
    %1020 = vmatpush1.msra.mxu0 %v907
    %1021 = vmatprep.subr.mxu0 0.0
    %1022 = vmatpush1.msra.mxu0 %v906
    %1023 = vmatprep.subr.mxu0 0.0
    %1024 = vmatpush1.msra.mxu0 %v905
    %1025 = vmatprep.subr.mxu0 0.0
    %1026 = vmatpush1.msra.mxu0 %v904
    %1027 = vmatprep.subr.mxu0 0.0
    %1028 = vmatpush1.msra.mxu0 %v903
    %1029 = vmatprep.subr.mxu0 0.0
    %1030 = vmatpush1.msra.mxu0 %v902
    %1031 = vmatprep.subr.mxu0 0.0
    %1032 = vmatpush1.msra.mxu0 %v901
    %1033 = vmatprep.subr.mxu0 0.0
    %1034 = vmatpush1.msra.mxu0 %v900
    %1035 = vmatprep.subr.mxu0 0.0
    %1036 = vmatpush1.msra.mxu0 %v899
    %1037 = vmatprep.subr.mxu0 0.0
    %1038 = vmatpush1.msra.mxu0 %v898
    %1039 = vmatprep.subr.mxu0 0.0
    %1040 = vmatpush2.msra.mxu0 %v929
    %1041 = vmatprep.subr.mxu0 0.0
    %1042 = vmatpush2.msra.mxu0 %v928
    %1043 = vmatprep.subr.mxu0 0.0
    %1044 = vmatpush2.msra.mxu0 %v927
    %1045 = vmatprep.subr.mxu0 0.0
    %1046 = vmatpush2.msra.mxu0 %v926
    %1047 = vmatprep.subr.mxu0 0.0
    %1048 = vmatpush2.msra.mxu0 %v925
    %1049 = vmatprep.subr.mxu0 0.0
    %1050 = vmatpush2.msra.mxu0 %v924
    %1051 = vmatprep.subr.mxu0 0.0
    %1052 = vmatpush2.msra.mxu0 %v923
    %1053 = vmatprep.subr.mxu0 0.0
    %1054 = vmatpush2.msra.mxu0 %v922
    %1055 = vmatprep.subr.mxu0 0.0
    %1056 = vmatpush2.msra.mxu0 %v921
    %1057 = vmatprep.subr.mxu0 0.0
    %1058 = vmatpush2.msra.mxu0 %v920
    %1059 = vmatprep.subr.mxu0 0.0
    %1060 = vmatpush2.msra.mxu0 %v919
    %1061 = vmatprep.subr.mxu0 0.0
    %1062 = vmatpush2.msra.mxu0 %v918
    %1063 = vmatprep.subr.mxu0 0.0
    %1064 = vmatpush2.msra.mxu0 %v917
    %1065 = vmatprep.subr.mxu0 0.0
    %1066 = vmatpush2.msra.mxu0 %v916
    %1067 = vmatprep.subr.mxu0 0.0
    %1068 = vmatpush2.msra.mxu0 %v915
    %1069 = vmatprep.subr.mxu0 0.0
    %1070 = vmatpush2.msra.mxu0 %v914
    %1071 = vmatprep.mubr.f32.mxu0 %v865
    %1072 = vmatmul.mubr.f32.gmra.mxu0 %v864
    %v1073 = vpop.f32.mrf.mxu0
    %v1074 = vadd.f32 %v1004, %v1073
    %v1075 = vpop.f32.mrf.mxu0
    %1076 = vdwg.mxu0
    %1077 = vst [vmem:[%s9] sm:$0xff] %v1074
    // Predicated region
    $region77: #{rnn_forward.1} parent=1 // pred_check
      _
    $region78: #{rnn_forward.1} parent=1 // pred_check_branch
      %1079 = sbr.rel (0) target = $region80
    $region79: #{rnn_forward.1} parent=1 // pred_region
      _
    $region80: #{rnn_forward.1} parent=1 // pred_fallthru
      _
    // Predicated region
    $region81: #{rnn_forward.1} parent=1 // pred_check
      _
    $region82: #{rnn_forward.1} parent=1 // pred_check_branch
      %1081 = sbr.rel (0) target = $region84
    $region83: #{rnn_forward.1} parent=1 // pred_region
      _
    $region84: #{rnn_forward.1} parent=1 // pred_fallthru
      _
    // Predicated region
    $region85: #{rnn_forward.1} parent=1 // pred_check
      _
    $region86: #{rnn_forward.1} parent=1 // pred_check_branch
      %1083 = sbr.rel (0) target = $region88
    $region87: #{rnn_forward.1} parent=1 // pred_region
      _
    $region88: #{rnn_forward.1} parent=1 // pred_fallthru
      _
    // Predicated region
    $region89: #{rnn_forward.1} parent=1 // pred_check
      _
    $region90: #{rnn_forward.1} parent=1 // pred_check_branch
      %1085 = sbr.rel (0) target = $region92
    $region91: #{rnn_forward.1} parent=1 // pred_region
      _
    $region92: #{rnn_forward.1} parent=1 // pred_fallthru
      _
    %1086 = vsyncpa [#allocation4], 1
    %1087 = vsyncpa [#allocation6], 1
    %1088 = vsyncpa [#allocation9], 1
    %1089 = vsyncpa [#allocation12], 1
    %1090 = vsyncpa [#allocation15], 1

</llo_original>
